<compile_context>
chip_gen: v7x
topology: tpu7x:2x2x1
jax: 0.10.0
libtpu: 0.0.40
codegen_flags: <defaults>
</compile_context>

<pallas_src>
import functools

import jax
import jax.numpy as jnp
from jax.experimental import pallas as pl
from jax.experimental.pallas import tpu as pltpu


_LOGIT_PAD = 128  # pad num_classes up to a lane-dense 128-wide output slab


# ----------------------------------------------------------------------------
# Fused kernel: folded (conv1x1 -> CLIP-stub projection) -> MLP head
# ----------------------------------------------------------------------------
def _fused_forward_kernel(x_ref, wp_ref, bp_ref, wfc_ref, bfc_ref,
                          w1_ref, b1_ref, w2_ref, b2_ref,
                          feat_ref, logits_ref):
    # Folded input_adjust + CLIP-stub projection:
    #   [B, C*H*W] @ [C*H*W, 512]  (bf16 operands, f32 accumulation on MXU)
    x_bf = x_ref[...].astype(jnp.bfloat16)
    feat = jnp.dot(x_bf, wp_ref[...], preferred_element_type=jnp.float32)
    feat = feat + bp_ref[...]
    feat_ref[...] = feat

    # MLP head (f32): fc -> linear1 -> LeakyReLU(0.01) -> linear2 -> ReLU
    h = jnp.dot(feat, wfc_ref[...],
                preferred_element_type=jnp.float32) + bfc_ref[...]
    h = jnp.dot(h, w1_ref[...],
                preferred_element_type=jnp.float32) + b1_ref[...]
    h = jnp.where(h > 0, h, 0.01 * h)            # nn.LeakyReLU default slope
    h = jnp.dot(h, w2_ref[...],
                preferred_element_type=jnp.float32) + b2_ref[...]
    logits_ref[...] = jnp.maximum(h, 0.0)        # nn.ReLU (padded lanes -> 0)


def _vmem():
    # Whole array, resident in VMEM, no grid / no pipelining.
    return pl.BlockSpec(memory_space=pltpu.MemorySpace.VMEM)


# ----------------------------------------------------------------------------
# Parameters (deterministic, PyTorch-default-like uniform init) + fusion
# ----------------------------------------------------------------------------
def make_raw_params(key, input_channels=4, num_classes=9, h=16, w=16):
    ks = jax.random.split(key, 9)

    def unif(k, shape, fan_in):
        bound = 1.0 / jnp.sqrt(jnp.float32(fan_in))
        return jax.random.uniform(k, shape, jnp.float32, -bound, bound)

    p = {}
    # input_adjust: Conv2d(input_channels, 3, kernel_size=1) — only if C != 3
    if input_channels != 3:
        p["adj_w"] = unif(ks[0], (input_channels, 3), input_channels)  # [Cin,3]
        p["adj_b"] = unif(ks[1], (3,), input_channels)
    else:
        p["adj_w"] = jnp.eye(3, dtype=jnp.float32)
        p["adj_b"] = jnp.zeros((3,), jnp.float32)
    # CLIP encode_image stand-in: [3*H*W, 512] (channels-last pixel flatten)
    p["clip_w"] = unif(ks[2], (3 * h * w, 512), 3 * h * w)
    # fc: Linear(512, 128)   (stored transposed for [B,512]@[512,128])
    p["fc_w"] = unif(ks[3], (512, 128), 512)
    p["fc_b"] = unif(ks[4], (1, 128), 512)
    # linear1: Linear(128, 128)
    p["l1_w"] = unif(ks[5], (128, 128), 128)
    p["l1_b"] = unif(ks[6], (1, 128), 128)
    # linear2: Linear(128, num_classes)
    p["l2_w"] = unif(ks[7], (128, num_classes), 128)
    p["l2_b"] = unif(ks[8], (1, num_classes), 128)
    return p


def fuse_params(raw, h, w, num_classes):
    """Fold the 1x1 conv into the projection weight; pad logits to 128 lanes."""
    clip_r = raw["clip_w"].reshape(h * w, 3, 512)            # [p, o, j]
    # W_fused[(c, p), j] = sum_o adj_w[c, o] * clip_w[(p, o), j]
    wp = jnp.einsum("co,poj->cpj", raw["adj_w"], clip_r).reshape(-1, 512)
    # b_fused[j]         = sum_{p, o} adj_b[o] * clip_w[(p, o), j]
    bp = jnp.einsum("o,poj->j", raw["adj_b"], clip_r).reshape(1, 512)

    pad = _LOGIT_PAD - num_classes
    l2_w = jnp.pad(raw["l2_w"], ((0, 0), (0, pad)))
    l2_b = jnp.pad(raw["l2_b"], ((0, 0), (0, pad)))
    return {
        "wp": wp.astype(jnp.bfloat16),   # dominant weight: bf16, f32-accumulate
        "bp": bp,
        "fc_w": raw["fc_w"], "fc_b": raw["fc_b"],
        "l1_w": raw["l1_w"], "l1_b": raw["l1_b"],
        "l2_w": l2_w, "l2_b": l2_b,
    }


# ----------------------------------------------------------------------------
# Forward pass
# ----------------------------------------------------------------------------
@functools.partial(jax.jit, static_argnames=("num_classes",))
def illumination_classifier_forward(x, fused, num_classes):
    """x: [B, C_in, H, W] float32 (NCHW, like PyTorch). Returns (logits, feature)."""
    B, C, H, W = x.shape
    x_flat = x.reshape(B, C * H * W)   # free reshape; matches wp row ordering

    feature, logits_pad = pl.pallas_call(
        _fused_forward_kernel,
        out_shape=(jax.ShapeDtypeStruct((B, 512), jnp.float32),
                   jax.ShapeDtypeStruct((B, _LOGIT_PAD), jnp.float32)),
        in_specs=[_vmem()] * 9,
        out_specs=(_vmem(), _vmem()),
    )(x_flat, fused["wp"], fused["bp"],
      fused["fc_w"], fused["fc_b"],
      fused["l1_w"], fused["l1_b"],
      fused["l2_w"], fused["l2_b"])

    return logits_pad[:, :num_classes], feature


# ----------------------------------------------------------------------------
# Pure-JAX unfused reference (f32) to verify the conv->projection fold.
# ----------------------------------------------------------------------------
def reference_forward(x, raw):
    B, C, H, W = x.shape
    xp = jnp.transpose(x, (0, 2, 3, 1)).reshape(B * H * W, C)
    y = xp @ raw["adj_w"] + raw["adj_b"]                     # 1x1 conv
    feat = y.reshape(B, 3 * H * W) @ raw["clip_w"]           # CLIP stub
    h = feat @ raw["fc_w"] + raw["fc_b"]
    h = h @ raw["l1_w"] + raw["l1_b"]
    h = jnp.where(h > 0, h, 0.01 * h)
    h = h @ raw["l2_w"] + raw["l2_b"]
    return jnp.maximum(h, 0.0), feat


# ----------------------------------------------------------------------------
if __name__ == "__main__":
    key = jax.random.PRNGKey(0)
    k_x, k_p = jax.random.split(key)

    B, C_IN, H, W = 2, 4, 16, 16
    NUM_CLASSES = 9

    x = jax.random.normal(k_x, (B, C_IN, H, W), dtype=jnp.float32)
    raw = make_raw_params(k_p, input_channels=C_IN, num_classes=NUM_CLASSES,
                          h=H, w=W)
    fused = fuse_params(raw, H, W, NUM_CLASSES)

    logits, feature = illumination_classifier_forward(x, fused, NUM_CLASSES)
    jax.block_until_ready((logits, feature))

    assert logits.shape == (B, NUM_CLASSES) and logits.dtype == jnp.float32
    assert feature.shape == (B, 512) and feature.dtype == jnp.float32
    assert bool(jnp.all(logits >= 0.0))  # ReLU output

    # Verify the folded weights + fused kernel against the unfused f32
    # reference path (bf16 projection operands -> loose-but-safe tolerance).
    ref_logits, ref_feature = reference_forward(x, raw)
    assert bool(jnp.allclose(feature, ref_feature, rtol=5e-2, atol=5e-2))
    assert bool(jnp.allclose(logits, ref_logits, rtol=5e-2, atol=5e-2))

    print("KERNEL_OK")
</pallas_src>

<mosaic_0001>
module attributes {stable_mosaic.version = 11 : i64} {
  func.func @_fused_forward_kernel(%arg0: memref<2x1024xf32, #tpu.memory_space<vmem>>, %arg1: memref<1024x512xbf16, #tpu.memory_space<vmem>>, %arg2: memref<1x512xf32, #tpu.memory_space<vmem>>, %arg3: memref<512x128xf32, #tpu.memory_space<vmem>>, %arg4: memref<1x128xf32, #tpu.memory_space<vmem>>, %arg5: memref<128x128xf32, #tpu.memory_space<vmem>>, %arg6: memref<1x128xf32, #tpu.memory_space<vmem>>, %arg7: memref<128x128xf32, #tpu.memory_space<vmem>>, %arg8: memref<1x128xf32, #tpu.memory_space<vmem>>, %arg9: memref<2x512xf32, #tpu.memory_space<vmem>>, %arg10: memref<2x128xf32, #tpu.memory_space<vmem>>) attributes {dimension_semantics = [], scalar_prefetch = 0 : i64, scratch_operands = 0 : i64, tpu.core_type = #tpu.core_type<tc>} {
    %c0 = arith.constant 0 : index
    %c0_0 = arith.constant 0 : index
    %0 = vector.load %arg0[%c0, %c0_0] : memref<2x1024xf32, #tpu.memory_space<vmem>>, vector<2x1024xf32>
    %1 = arith.truncf %0 : vector<2x1024xf32> to vector<2x1024xbf16>
    %c0_1 = arith.constant 0 : index
    %c0_2 = arith.constant 0 : index
    %2 = vector.load %arg1[%c0_1, %c0_2] : memref<1024x512xbf16, #tpu.memory_space<vmem>>, vector<1024x512xbf16>
    %cst = arith.constant dense<0.000000e+00> : vector<2x512xf32>
    %3 = tpu.matmul %1, %2, %cst {dimension_numbers = #tpu.dot_dimension_numbers<[1], [0], [0], [1], [0, 0, 1, 1], [], []>} : vector<2x1024xbf16>, vector<1024x512xbf16>, vector<2x512xf32> -> vector<2x512xf32>
    %c0_3 = arith.constant 0 : index
    %c0_4 = arith.constant 0 : index
    %4 = vector.load %arg2[%c0_3, %c0_4] : memref<1x512xf32, #tpu.memory_space<vmem>>, vector<1x512xf32>
    %5 = vector.broadcast %4 : vector<1x512xf32> to vector<2x512xf32>
    %6 = arith.addf %3, %5 : vector<2x512xf32>
    %c0_5 = arith.constant 0 : index
    %c0_6 = arith.constant 0 : index
    %7 = vector.load %arg9[%c0_5, %c0_6] : memref<2x512xf32, #tpu.memory_space<vmem>>, vector<2x512xf32>
    tpu.vector_store %arg9[%c0_5, %c0_6], %6 {strides = array<i32>} : memref<2x512xf32, #tpu.memory_space<vmem>>, vector<2x512xf32>,
    %c0_7 = arith.constant 0 : index
    %c0_8 = arith.constant 0 : index
    %8 = vector.load %arg3[%c0_7, %c0_8] : memref<512x128xf32, #tpu.memory_space<vmem>>, vector<512x128xf32>
    %cst_9 = arith.constant dense<0.000000e+00> : vector<2x128xf32>
    %9 = tpu.matmul %6, %8, %cst_9 {dimension_numbers = #tpu.dot_dimension_numbers<[1], [0], [0], [1], [0, 0, 1, 1], [], []>} : vector<2x512xf32>, vector<512x128xf32>, vector<2x128xf32> -> vector<2x128xf32>
    %c0_10 = arith.constant 0 : index
    %c0_11 = arith.constant 0 : index
    %10 = vector.load %arg4[%c0_10, %c0_11] : memref<1x128xf32, #tpu.memory_space<vmem>>, vector<1x128xf32>
    %11 = vector.broadcast %10 : vector<1x128xf32> to vector<2x128xf32>
    %12 = arith.addf %9, %11 : vector<2x128xf32>
    %c0_12 = arith.constant 0 : index
    %c0_13 = arith.constant 0 : index
    %13 = vector.load %arg5[%c0_12, %c0_13] : memref<128x128xf32, #tpu.memory_space<vmem>>, vector<128x128xf32>
    %cst_14 = arith.constant dense<0.000000e+00> : vector<2x128xf32>
    %14 = tpu.matmul %12, %13, %cst_14 {dimension_numbers = #tpu.dot_dimension_numbers<[1], [0], [0], [1], [0, 0, 1, 1], [], []>} : vector<2x128xf32>, vector<128x128xf32>, vector<2x128xf32> -> vector<2x128xf32>
    %c0_15 = arith.constant 0 : index
    %c0_16 = arith.constant 0 : index
    %15 = vector.load %arg6[%c0_15, %c0_16] : memref<1x128xf32, #tpu.memory_space<vmem>>, vector<1x128xf32>
    %16 = vector.broadcast %15 : vector<1x128xf32> to vector<2x128xf32>
    %17 = arith.addf %14, %16 : vector<2x128xf32>
    %cst_17 = arith.constant 0.000000e+00 : f32
    %18 = vector.broadcast %cst_17 : f32 to vector<2x128xf32>
    %19 = arith.cmpf ogt, %17, %18 : vector<2x128xf32>
    %cst_18 = arith.constant 0.00999999977 : f32
    %20 = vector.broadcast %cst_18 : f32 to vector<2x128xf32>
    %21 = arith.mulf %20, %17 : vector<2x128xf32>
    %22 = arith.select %19, %17, %21 : vector<2x128xi1>, vector<2x128xf32>
    %c0_19 = arith.constant 0 : index
    %c0_20 = arith.constant 0 : index
    %23 = vector.load %arg7[%c0_19, %c0_20] : memref<128x128xf32, #tpu.memory_space<vmem>>, vector<128x128xf32>
    %cst_21 = arith.constant dense<0.000000e+00> : vector<2x128xf32>
    %24 = tpu.matmul %22, %23, %cst_21 {dimension_numbers = #tpu.dot_dimension_numbers<[1], [0], [0], [1], [0, 0, 1, 1], [], []>} : vector<2x128xf32>, vector<128x128xf32>, vector<2x128xf32> -> vector<2x128xf32>
    %c0_22 = arith.constant 0 : index
    %c0_23 = arith.constant 0 : index
    %25 = vector.load %arg8[%c0_22, %c0_23] : memref<1x128xf32, #tpu.memory_space<vmem>>, vector<1x128xf32>
    %26 = vector.broadcast %25 : vector<1x128xf32> to vector<2x128xf32>
    %27 = arith.addf %24, %26 : vector<2x128xf32>
    %cst_24 = arith.constant 0.000000e+00 : f32
    %28 = vector.broadcast %cst_24 : f32 to vector<2x128xf32>
    %29 = arith.maximumf %27, %28 : vector<2x128xf32>
    %c0_25 = arith.constant 0 : index
    %c0_26 = arith.constant 0 : index
    %30 = vector.load %arg10[%c0_25, %c0_26] : memref<2x128xf32, #tpu.memory_space<vmem>>, vector<2x128xf32>
    tpu.vector_store %arg10[%c0_25, %c0_26], %29 {strides = array<i32>} : memref<2x128xf32, #tpu.memory_space<vmem>>, vector<2x128xf32>,
    return
  }
}

</mosaic_0001>

<llo_original>
// kernel: illumination_classifier_forward.1
$region0: #{illumination_classifier_forward.1}
  #allocation0 [shape = 'u32[]', space=smem, size = 0x4, offset = 0x4, fixed_abs, tag = 'smem constant byte address 0x4 - core index']
  #allocation1 [shape = 'u32[144,128]{1,0:T(1,128)}', space=vmem, size = 0x12000, scoped, tag = 'internal scratch']
  %s0 = inlined_call_operand.vmem [shape: f32[2,1024], index: 0, kind: input, shape index: {}]
  %s1 = inlined_call_operand.hbm [shape: bf16[1024,512], index: 1, kind: input, shape index: {}]
  %s2 = inlined_call_operand.vmem [shape: f32[1,512], index: 2, kind: input, shape index: {}]
  %s3 = inlined_call_operand.hbm [shape: f32[512,128], index: 3, kind: input, shape index: {}]
  %s4 = inlined_call_operand.vmem [shape: f32[1,128], index: 4, kind: input, shape index: {}]
  %s5 = inlined_call_operand.vmem [shape: f32[128,128], index: 5, kind: input, shape index: {}]
  %s6 = inlined_call_operand.vmem [shape: f32[1,128], index: 6, kind: input, shape index: {}]
  %s7 = inlined_call_operand.hbm [shape: f32[128,128], index: 7, kind: input, shape index: {}]
  %s8 = inlined_call_operand.vmem [shape: f32[1,128], index: 8, kind: input, shape index: {}]
  %s9 = inlined_call_operand.hbm [shape: f32[2,512], index: 9, kind: output, shape index: {0}]
  %s10 = inlined_call_operand.hbm [shape: f32[2,128], index: 10, kind: output, shape index: {1}]
  %11 = xla_tuple %s9, %s10
  %s12 = sld [smem:[#allocation0]]
  $region66: #{illumination_classifier_forward.1} parent=0
    _
  %s14 = ssub.s32 1, %s12
  %s15 = scalar_select 0, %s14, %s12
  $region1: #{illumination_classifier_forward.1} parent=0
    #allocation2 [shape = 'u8[1048576]{0}', space=vmem, size = 0x100000, scoped, tag = 'input window, operand 1, single buffered']
    #allocation3 [shape = 's32[1]{0}', space=sflag, size = 0x4, scoped, tag = 'scoped memory for illumination_classifier_forward.1']
    #allocation4 [shape = 's32[1]{0}', space=sflag, size = 0x4, scoped, tag = 'scoped memory for illumination_classifier_forward.1']
    #allocation5 [shape = 'u8[262144]{0}', space=vmem, size = 0x40000, scoped, tag = 'input window, operand 3, single buffered']
    #allocation6 [shape = 's32[1]{0}', space=sflag, size = 0x4, scoped, tag = 'scoped memory for illumination_classifier_forward.1']
    #allocation7 [shape = 'u8[65536]{0}', space=vmem, size = 0x10000, scoped, tag = 'input window, operand 7, single buffered']
    #allocation8 [shape = 'u8[4096]{0}', space=vmem, size = 0x1000, scoped, tag = 'output window, operand 0, single buffered']
    #allocation9 [shape = 'u8[1024]{0}', space=vmem, size = 0x400, scoped, tag = 'output window, operand 1, single buffered']
    #allocation10 [shape = 's32[1]{0}', space=sflag, size = 0x4, scoped, tag = 'scoped memory for illumination_classifier_forward.1']
    %16 = vsyncpa [#allocation3], 0
    %17 = vsyncpa [#allocation6], 0
    %18 = vsyncpa [#allocation4], 0
    %19 = vsyncpa [#allocation10], 0
    // Predicated region
    $region2: #{illumination_classifier_forward.1} parent=1 // pred_check
      _
    $region3: #{illumination_classifier_forward.1} parent=1 // pred_check_branch
      %21 = sbr.rel (0) target = $region5
    $region4: #{illumination_classifier_forward.1} parent=1 // pred_region
      _
    $region5: #{illumination_classifier_forward.1} parent=1 // pred_fallthru
      _
    // Predicated region
    $region6: #{illumination_classifier_forward.1} parent=1 // pred_check
      _
    $region7: #{illumination_classifier_forward.1} parent=1 // pred_check_branch
      %23 = sbr.rel (0) target = $region9
    $region8: #{illumination_classifier_forward.1} parent=1 // pred_region
      %s25 = ssub.s32 32768, 32768
      %26 = vsyncadd [#allocation3], %s25
      %s27 = sshll.u32 [#allocation2], 4
      %s28 = int_to_ptr.vmem [resolvable:$true] %s27
      %33 = dma.hbm_to_vmem [thread:$0]  %s1, 32768, %s28, [#allocation3], 256, 256, 16
    $region9: #{illumination_classifier_forward.1} parent=1 // pred_fallthru
      _
    // Predicated region
    $region10: #{illumination_classifier_forward.1} parent=1 // pred_check
      _
    $region11: #{illumination_classifier_forward.1} parent=1 // pred_check_branch
      %35 = sbr.rel (0) target = $region13
    $region12: #{illumination_classifier_forward.1} parent=1 // pred_region
      _
    $region13: #{illumination_classifier_forward.1} parent=1 // pred_fallthru
      _
    // Predicated region
    $region14: #{illumination_classifier_forward.1} parent=1 // pred_check
      _
    $region15: #{illumination_classifier_forward.1} parent=1 // pred_check_branch
      %37 = sbr.rel (0) target = $region17
    $region16: #{illumination_classifier_forward.1} parent=1 // pred_region
      %s39 = ssub.s32 8192, 8192
      %40 = vsyncadd [#allocation6], %s39
      %s41 = sshll.u32 [#allocation5], 4
      %s42 = int_to_ptr.vmem [resolvable:$true] %s41
      %47 = dma.hbm_to_vmem [thread:$0]  %s3, 8192, %s42, [#allocation6], 128, 128, 8
    $region17: #{illumination_classifier_forward.1} parent=1 // pred_fallthru
      _
    // Predicated region
    $region18: #{illumination_classifier_forward.1} parent=1 // pred_check
      _
    $region19: #{illumination_classifier_forward.1} parent=1 // pred_check_branch
      %49 = sbr.rel (0) target = $region21
    $region20: #{illumination_classifier_forward.1} parent=1 // pred_region
      _
    $region21: #{illumination_classifier_forward.1} parent=1 // pred_fallthru
      _
    // Predicated region
    $region22: #{illumination_classifier_forward.1} parent=1 // pred_check
      _
    $region23: #{illumination_classifier_forward.1} parent=1 // pred_check_branch
      %51 = sbr.rel (0) target = $region25
    $region24: #{illumination_classifier_forward.1} parent=1 // pred_region
      _
    $region25: #{illumination_classifier_forward.1} parent=1 // pred_fallthru
      _
    // Predicated region
    $region26: #{illumination_classifier_forward.1} parent=1 // pred_check
      _
    $region27: #{illumination_classifier_forward.1} parent=1 // pred_check_branch
      %53 = sbr.rel (0) target = $region29
    $region28: #{illumination_classifier_forward.1} parent=1 // pred_region
      _
    $region29: #{illumination_classifier_forward.1} parent=1 // pred_fallthru
      _
    // Predicated region
    $region30: #{illumination_classifier_forward.1} parent=1 // pred_check
      _
    $region31: #{illumination_classifier_forward.1} parent=1 // pred_check_branch
      %55 = sbr.rel (0) target = $region33
    $region32: #{illumination_classifier_forward.1} parent=1 // pred_region
      %s57 = ssub.s32 2048, 2048
      %58 = vsyncadd [#allocation6], %s57
      %s59 = sshll.u32 [#allocation7], 4
      %s60 = int_to_ptr.vmem [resolvable:$true] %s59
      %65 = dma.hbm_to_vmem [thread:$0]  %s7, 2048, %s60, [#allocation6], 128, 128, 8
    $region33: #{illumination_classifier_forward.1} parent=1 // pred_fallthru
      _
    // Predicated region
    $region34: #{illumination_classifier_forward.1} parent=1 // pred_check
      _
    $region35: #{illumination_classifier_forward.1} parent=1 // pred_check_branch
      %67 = sbr.rel (0) target = $region37
    $region36: #{illumination_classifier_forward.1} parent=1 // pred_region
      _
    $region37: #{illumination_classifier_forward.1} parent=1 // pred_fallthru
      _
    // Predicated region
    $region38: #{illumination_classifier_forward.1} parent=1 // pred_check
      _
    $region39: #{illumination_classifier_forward.1} parent=1 // pred_check_branch
      %69 = sbr.rel (0) target = $region41
    $region40: #{illumination_classifier_forward.1} parent=1 // pred_region
      %70 = dma.done [#allocation3], 32768
    $region41: #{illumination_classifier_forward.1} parent=1 // pred_fallthru
      _
    // Predicated region
    $region42: #{illumination_classifier_forward.1} parent=1 // pred_check
      _
    $region43: #{illumination_classifier_forward.1} parent=1 // pred_check_branch
      %72 = sbr.rel (0) target = $region45
    $region44: #{illumination_classifier_forward.1} parent=1 // pred_region
      %73 = dma.done [#allocation6], 8192
    $region45: #{illumination_classifier_forward.1} parent=1 // pred_fallthru
      _
    // Predicated region
    $region46: #{illumination_classifier_forward.1} parent=1 // pred_check
      _
    $region47: #{illumination_classifier_forward.1} parent=1 // pred_check_branch
      %75 = sbr.rel (0) target = $region49
    $region48: #{illumination_classifier_forward.1} parent=1 // pred_region
      %76 = dma.done [#allocation6], 2048
    $region49: #{illumination_classifier_forward.1} parent=1 // pred_fallthru
      _
    %v77 = vld [vmem:[%s0] sm:$0xff]
    %v78 = vld [vmem:[%s0 + $0x8] sm:$0xff]
    %v81 = vcombine.high %v77, %v77
    %v83 = vunpack.c.l.s4 1983009808
    %v84 = vunpack.c.0.s8 %v83
    %v85 = vlaneseq
    %v86 = vshrl.u32 %v85, 7
    %v87 = vsub.s32 %v84, %v86
    %v88 = vrot.slane %v77, %v87
    %v90 = vunpack.c.l.s4 1983009808
    %v91 = vunpack.c.0.s8 %v90
    %v92 = vlaneseq
    %v93 = vshrl.u32 %v92, 7
    %v94 = vsub.s32 %v91, %v93
    %v95 = vrot.slane %v81, %v94
    %v96 = vcombine.high %v88, %v88
    %v97 = vcombine.high %v95, %v95
    %v98 = vcombine.high %v78, %v78
    %v100 = vunpack.c.l.s4 1983009808
    %v101 = vunpack.c.0.s8 %v100
    %v102 = vlaneseq
    %v103 = vshrl.u32 %v102, 7
    %v104 = vsub.s32 %v101, %v103
    %v105 = vrot.slane %v78, %v104
    %v107 = vunpack.c.l.s4 1983009808
    %v108 = vunpack.c.0.s8 %v107
    %v109 = vlaneseq
    %v110 = vshrl.u32 %v109, 7
    %v111 = vsub.s32 %v108, %v110
    %v112 = vrot.slane %v98, %v111
    %v113 = vcombine.high %v105, %v105
    %v114 = vcombine.high %v112, %v112
    %v123 = vpack.c.bf16 %v88, %v88
    %v124 = vpack.c.bf16 %v96, %v96
    %v125 = vpack.c.bf16 %v95, %v95
    %v126 = vpack.c.bf16 %v97, %v97
    %v127 = vpack.c.bf16 %v105, %v105
    %v128 = vpack.c.bf16 %v113, %v113
    %v129 = vpack.c.bf16 %v112, %v112
    %v130 = vpack.c.bf16 %v114, %v114
    %v131 = vld [vmem:[#allocation2] sm:$0xff]
    %v132 = vld [vmem:[#allocation2 + $0x8] sm:$0xff]
    %v133 = vld [vmem:[#allocation2 + $0x10] sm:$0xff]
    %v134 = vld [vmem:[#allocation2 + $0x18] sm:$0xff]
    %v135 = vld [vmem:[#allocation2 + $0x20] sm:$0xff]
    %v136 = vld [vmem:[#allocation2 + $0x28] sm:$0xff]
    %v137 = vld [vmem:[#allocation2 + $0x30] sm:$0xff]
    %v138 = vld [vmem:[#allocation2 + $0x38] sm:$0xff]
    %v139 = vld [vmem:[#allocation2 + $0x40] sm:$0xff]
    %v140 = vld [vmem:[#allocation2 + $0x48] sm:$0xff]
    %v141 = vld [vmem:[#allocation2 + $0x50] sm:$0xff]
    %v142 = vld [vmem:[#allocation2 + $0x58] sm:$0xff]
    %v143 = vld [vmem:[#allocation2 + $0x60] sm:$0xff]
    %v144 = vld [vmem:[#allocation2 + $0x68] sm:$0xff]
    %v145 = vld [vmem:[#allocation2 + $0x70] sm:$0xff]
    %v146 = vld [vmem:[#allocation2 + $0x78] sm:$0xff]
    %v147 = vld [vmem:[#allocation2 + $0x80] sm:$0xff]
    %v148 = vld [vmem:[#allocation2 + $0x88] sm:$0xff]
    %v149 = vld [vmem:[#allocation2 + $0x90] sm:$0xff]
    %v150 = vld [vmem:[#allocation2 + $0x98] sm:$0xff]
    %v151 = vld [vmem:[#allocation2 + $0xa0] sm:$0xff]
    %v152 = vld [vmem:[#allocation2 + $0xa8] sm:$0xff]
    %v153 = vld [vmem:[#allocation2 + $0xb0] sm:$0xff]
    %v154 = vld [vmem:[#allocation2 + $0xb8] sm:$0xff]
    %v155 = vld [vmem:[#allocation2 + $0xc0] sm:$0xff]
    %v156 = vld [vmem:[#allocation2 + $0xc8] sm:$0xff]
    %v157 = vld [vmem:[#allocation2 + $0xd0] sm:$0xff]
    %v158 = vld [vmem:[#allocation2 + $0xd8] sm:$0xff]
    %v159 = vld [vmem:[#allocation2 + $0xe0] sm:$0xff]
    %v160 = vld [vmem:[#allocation2 + $0xe8] sm:$0xff]
    %v161 = vld [vmem:[#allocation2 + $0xf0] sm:$0xff]
    %v162 = vld [vmem:[#allocation2 + $0xf8] sm:$0xff]
    %v163 = vld [vmem:[#allocation2 + $0x100] sm:$0xff]
    %v164 = vld [vmem:[#allocation2 + $0x108] sm:$0xff]
    %v165 = vld [vmem:[#allocation2 + $0x110] sm:$0xff]
    %v166 = vld [vmem:[#allocation2 + $0x118] sm:$0xff]
    %v167 = vld [vmem:[#allocation2 + $0x120] sm:$0xff]
    %v168 = vld [vmem:[#allocation2 + $0x128] sm:$0xff]
    %v169 = vld [vmem:[#allocation2 + $0x130] sm:$0xff]
    %v170 = vld [vmem:[#allocation2 + $0x138] sm:$0xff]
    %v171 = vld [vmem:[#allocation2 + $0x140] sm:$0xff]
    %v172 = vld [vmem:[#allocation2 + $0x148] sm:$0xff]
    %v173 = vld [vmem:[#allocation2 + $0x150] sm:$0xff]
    %v174 = vld [vmem:[#allocation2 + $0x158] sm:$0xff]
    %v175 = vld [vmem:[#allocation2 + $0x160] sm:$0xff]
    %v176 = vld [vmem:[#allocation2 + $0x168] sm:$0xff]
    %v177 = vld [vmem:[#allocation2 + $0x170] sm:$0xff]
    %v178 = vld [vmem:[#allocation2 + $0x178] sm:$0xff]
    %v179 = vld [vmem:[#allocation2 + $0x180] sm:$0xff]
    %v180 = vld [vmem:[#allocation2 + $0x188] sm:$0xff]
    %v181 = vld [vmem:[#allocation2 + $0x190] sm:$0xff]
    %v182 = vld [vmem:[#allocation2 + $0x198] sm:$0xff]
    %v183 = vld [vmem:[#allocation2 + $0x1a0] sm:$0xff]
    %v184 = vld [vmem:[#allocation2 + $0x1a8] sm:$0xff]
    %v185 = vld [vmem:[#allocation2 + $0x1b0] sm:$0xff]
    %v186 = vld [vmem:[#allocation2 + $0x1b8] sm:$0xff]
    %v187 = vld [vmem:[#allocation2 + $0x1c0] sm:$0xff]
    %v188 = vld [vmem:[#allocation2 + $0x1c8] sm:$0xff]
    %v189 = vld [vmem:[#allocation2 + $0x1d0] sm:$0xff]
    %v190 = vld [vmem:[#allocation2 + $0x1d8] sm:$0xff]
    %v191 = vld [vmem:[#allocation2 + $0x1e0] sm:$0xff]
    %v192 = vld [vmem:[#allocation2 + $0x1e8] sm:$0xff]
    %v193 = vld [vmem:[#allocation2 + $0x1f0] sm:$0xff]
    %v194 = vld [vmem:[#allocation2 + $0x1f8] sm:$0xff]
    %v195 = vld [vmem:[#allocation2 + $0x200] sm:$0xff]
    %v196 = vld [vmem:[#allocation2 + $0x208] sm:$0xff]
    %v197 = vld [vmem:[#allocation2 + $0x210] sm:$0xff]
    %v198 = vld [vmem:[#allocation2 + $0x218] sm:$0xff]
    %v199 = vld [vmem:[#allocation2 + $0x220] sm:$0xff]
    %v200 = vld [vmem:[#allocation2 + $0x228] sm:$0xff]
    %v201 = vld [vmem:[#allocation2 + $0x230] sm:$0xff]
    %v202 = vld [vmem:[#allocation2 + $0x238] sm:$0xff]
    %v203 = vld [vmem:[#allocation2 + $0x240] sm:$0xff]
    %v204 = vld [vmem:[#allocation2 + $0x248] sm:$0xff]
    %v205 = vld [vmem:[#allocation2 + $0x250] sm:$0xff]
    %v206 = vld [vmem:[#allocation2 + $0x258] sm:$0xff]
    %v207 = vld [vmem:[#allocation2 + $0x260] sm:$0xff]
    %v208 = vld [vmem:[#allocation2 + $0x268] sm:$0xff]
    %v209 = vld [vmem:[#allocation2 + $0x270] sm:$0xff]
    %v210 = vld [vmem:[#allocation2 + $0x278] sm:$0xff]
    %v211 = vld [vmem:[#allocation2 + $0x280] sm:$0xff]
    %v212 = vld [vmem:[#allocation2 + $0x288] sm:$0xff]
    %v213 = vld [vmem:[#allocation2 + $0x290] sm:$0xff]
    %v214 = vld [vmem:[#allocation2 + $0x298] sm:$0xff]
    %v215 = vld [vmem:[#allocation2 + $0x2a0] sm:$0xff]
    %v216 = vld [vmem:[#allocation2 + $0x2a8] sm:$0xff]
    %v217 = vld [vmem:[#allocation2 + $0x2b0] sm:$0xff]
    %v218 = vld [vmem:[#allocation2 + $0x2b8] sm:$0xff]
    %v219 = vld [vmem:[#allocation2 + $0x2c0] sm:$0xff]
    %v220 = vld [vmem:[#allocation2 + $0x2c8] sm:$0xff]
    %v221 = vld [vmem:[#allocation2 + $0x2d0] sm:$0xff]
    %v222 = vld [vmem:[#allocation2 + $0x2d8] sm:$0xff]
    %v223 = vld [vmem:[#allocation2 + $0x2e0] sm:$0xff]
    %v224 = vld [vmem:[#allocation2 + $0x2e8] sm:$0xff]
    %v225 = vld [vmem:[#allocation2 + $0x2f0] sm:$0xff]
    %v226 = vld [vmem:[#allocation2 + $0x2f8] sm:$0xff]
    %v227 = vld [vmem:[#allocation2 + $0x300] sm:$0xff]
    %v228 = vld [vmem:[#allocation2 + $0x308] sm:$0xff]
    %v229 = vld [vmem:[#allocation2 + $0x310] sm:$0xff]
    %v230 = vld [vmem:[#allocation2 + $0x318] sm:$0xff]
    %v231 = vld [vmem:[#allocation2 + $0x320] sm:$0xff]
    %v232 = vld [vmem:[#allocation2 + $0x328] sm:$0xff]
    %v233 = vld [vmem:[#allocation2 + $0x330] sm:$0xff]
    %v234 = vld [vmem:[#allocation2 + $0x338] sm:$0xff]
    %v235 = vld [vmem:[#allocation2 + $0x340] sm:$0xff]
    %v236 = vld [vmem:[#allocation2 + $0x348] sm:$0xff]
    %v237 = vld [vmem:[#allocation2 + $0x350] sm:$0xff]
    %v238 = vld [vmem:[#allocation2 + $0x358] sm:$0xff]
    %v239 = vld [vmem:[#allocation2 + $0x360] sm:$0xff]
    %v240 = vld [vmem:[#allocation2 + $0x368] sm:$0xff]
    %v241 = vld [vmem:[#allocation2 + $0x370] sm:$0xff]
    %v242 = vld [vmem:[#allocation2 + $0x378] sm:$0xff]
    %v243 = vld [vmem:[#allocation2 + $0x380] sm:$0xff]
    %v244 = vld [vmem:[#allocation2 + $0x388] sm:$0xff]
    %v245 = vld [vmem:[#allocation2 + $0x390] sm:$0xff]
    %v246 = vld [vmem:[#allocation2 + $0x398] sm:$0xff]
    %v247 = vld [vmem:[#allocation2 + $0x3a0] sm:$0xff]
    %v248 = vld [vmem:[#allocation2 + $0x3a8] sm:$0xff]
    %v249 = vld [vmem:[#allocation2 + $0x3b0] sm:$0xff]
    %v250 = vld [vmem:[#allocation2 + $0x3b8] sm:$0xff]
    %v251 = vld [vmem:[#allocation2 + $0x3c0] sm:$0xff]
    %v252 = vld [vmem:[#allocation2 + $0x3c8] sm:$0xff]
    %v253 = vld [vmem:[#allocation2 + $0x3d0] sm:$0xff]
    %v254 = vld [vmem:[#allocation2 + $0x3d8] sm:$0xff]
    %v255 = vld [vmem:[#allocation2 + $0x3e0] sm:$0xff]
    %v256 = vld [vmem:[#allocation2 + $0x3e8] sm:$0xff]
    %v257 = vld [vmem:[#allocation2 + $0x3f0] sm:$0xff]
    %v258 = vld [vmem:[#allocation2 + $0x3f8] sm:$0xff]
    %v259 = vld [vmem:[#allocation2 + $0x400] sm:$0xff]
    %v260 = vld [vmem:[#allocation2 + $0x408] sm:$0xff]
    %v261 = vld [vmem:[#allocation2 + $0x410] sm:$0xff]
    %v262 = vld [vmem:[#allocation2 + $0x418] sm:$0xff]
    %v263 = vld [vmem:[#allocation2 + $0x420] sm:$0xff]
    %v264 = vld [vmem:[#allocation2 + $0x428] sm:$0xff]
    %v265 = vld [vmem:[#allocation2 + $0x430] sm:$0xff]
    %v266 = vld [vmem:[#allocation2 + $0x438] sm:$0xff]
    %v267 = vld [vmem:[#allocation2 + $0x440] sm:$0xff]
    %v268 = vld [vmem:[#allocation2 + $0x448] sm:$0xff]
    %v269 = vld [vmem:[#allocation2 + $0x450] sm:$0xff]
    %v270 = vld [vmem:[#allocation2 + $0x458] sm:$0xff]
    %v271 = vld [vmem:[#allocation2 + $0x460] sm:$0xff]
    %v272 = vld [vmem:[#allocation2 + $0x468] sm:$0xff]
    %v273 = vld [vmem:[#allocation2 + $0x470] sm:$0xff]
    %v274 = vld [vmem:[#allocation2 + $0x478] sm:$0xff]
    %v275 = vld [vmem:[#allocation2 + $0x480] sm:$0xff]
    %v276 = vld [vmem:[#allocation2 + $0x488] sm:$0xff]
    %v277 = vld [vmem:[#allocation2 + $0x490] sm:$0xff]
    %v278 = vld [vmem:[#allocation2 + $0x498] sm:$0xff]
    %v279 = vld [vmem:[#allocation2 + $0x4a0] sm:$0xff]
    %v280 = vld [vmem:[#allocation2 + $0x4a8] sm:$0xff]
    %v281 = vld [vmem:[#allocation2 + $0x4b0] sm:$0xff]
    %v282 = vld [vmem:[#allocation2 + $0x4b8] sm:$0xff]
    %v283 = vld [vmem:[#allocation2 + $0x4c0] sm:$0xff]
    %v284 = vld [vmem:[#allocation2 + $0x4c8] sm:$0xff]
    %v285 = vld [vmem:[#allocation2 + $0x4d0] sm:$0xff]
    %v286 = vld [vmem:[#allocation2 + $0x4d8] sm:$0xff]
    %v287 = vld [vmem:[#allocation2 + $0x4e0] sm:$0xff]
    %v288 = vld [vmem:[#allocation2 + $0x4e8] sm:$0xff]
    %v289 = vld [vmem:[#allocation2 + $0x4f0] sm:$0xff]
    %v290 = vld [vmem:[#allocation2 + $0x4f8] sm:$0xff]
    %v291 = vld [vmem:[#allocation2 + $0x500] sm:$0xff]
    %v292 = vld [vmem:[#allocation2 + $0x508] sm:$0xff]
    %v293 = vld [vmem:[#allocation2 + $0x510] sm:$0xff]
    %v294 = vld [vmem:[#allocation2 + $0x518] sm:$0xff]
    %v295 = vld [vmem:[#allocation2 + $0x520] sm:$0xff]
    %v296 = vld [vmem:[#allocation2 + $0x528] sm:$0xff]
    %v297 = vld [vmem:[#allocation2 + $0x530] sm:$0xff]
    %v298 = vld [vmem:[#allocation2 + $0x538] sm:$0xff]
    %v299 = vld [vmem:[#allocation2 + $0x540] sm:$0xff]
    %v300 = vld [vmem:[#allocation2 + $0x548] sm:$0xff]
    %v301 = vld [vmem:[#allocation2 + $0x550] sm:$0xff]
    %v302 = vld [vmem:[#allocation2 + $0x558] sm:$0xff]
    %v303 = vld [vmem:[#allocation2 + $0x560] sm:$0xff]
    %v304 = vld [vmem:[#allocation2 + $0x568] sm:$0xff]
    %v305 = vld [vmem:[#allocation2 + $0x570] sm:$0xff]
    %v306 = vld [vmem:[#allocation2 + $0x578] sm:$0xff]
    %v307 = vld [vmem:[#allocation2 + $0x580] sm:$0xff]
    %v308 = vld [vmem:[#allocation2 + $0x588] sm:$0xff]
    %v309 = vld [vmem:[#allocation2 + $0x590] sm:$0xff]
    %v310 = vld [vmem:[#allocation2 + $0x598] sm:$0xff]
    %v311 = vld [vmem:[#allocation2 + $0x5a0] sm:$0xff]
    %v312 = vld [vmem:[#allocation2 + $0x5a8] sm:$0xff]
    %v313 = vld [vmem:[#allocation2 + $0x5b0] sm:$0xff]
    %v314 = vld [vmem:[#allocation2 + $0x5b8] sm:$0xff]
    %v315 = vld [vmem:[#allocation2 + $0x5c0] sm:$0xff]
    %v316 = vld [vmem:[#allocation2 + $0x5c8] sm:$0xff]
    %v317 = vld [vmem:[#allocation2 + $0x5d0] sm:$0xff]
    %v318 = vld [vmem:[#allocation2 + $0x5d8] sm:$0xff]
    %v319 = vld [vmem:[#allocation2 + $0x5e0] sm:$0xff]
    %v320 = vld [vmem:[#allocation2 + $0x5e8] sm:$0xff]
    %v321 = vld [vmem:[#allocation2 + $0x5f0] sm:$0xff]
    %v322 = vld [vmem:[#allocation2 + $0x5f8] sm:$0xff]
    %v323 = vld [vmem:[#allocation2 + $0x600] sm:$0xff]
    %v324 = vld [vmem:[#allocation2 + $0x608] sm:$0xff]
    %v325 = vld [vmem:[#allocation2 + $0x610] sm:$0xff]
    %v326 = vld [vmem:[#allocation2 + $0x618] sm:$0xff]
    %v327 = vld [vmem:[#allocation2 + $0x620] sm:$0xff]
    %v328 = vld [vmem:[#allocation2 + $0x628] sm:$0xff]
    %v329 = vld [vmem:[#allocation2 + $0x630] sm:$0xff]
    %v330 = vld [vmem:[#allocation2 + $0x638] sm:$0xff]
    %v331 = vld [vmem:[#allocation2 + $0x640] sm:$0xff]
    %v332 = vld [vmem:[#allocation2 + $0x648] sm:$0xff]
    %v333 = vld [vmem:[#allocation2 + $0x650] sm:$0xff]
    %v334 = vld [vmem:[#allocation2 + $0x658] sm:$0xff]
    %v335 = vld [vmem:[#allocation2 + $0x660] sm:$0xff]
    %v336 = vld [vmem:[#allocation2 + $0x668] sm:$0xff]
    %v337 = vld [vmem:[#allocation2 + $0x670] sm:$0xff]
    %v338 = vld [vmem:[#allocation2 + $0x678] sm:$0xff]
    %v339 = vld [vmem:[#allocation2 + $0x680] sm:$0xff]
    %v340 = vld [vmem:[#allocation2 + $0x688] sm:$0xff]
    %v341 = vld [vmem:[#allocation2 + $0x690] sm:$0xff]
    %v342 = vld [vmem:[#allocation2 + $0x698] sm:$0xff]
    %v343 = vld [vmem:[#allocation2 + $0x6a0] sm:$0xff]
    %v344 = vld [vmem:[#allocation2 + $0x6a8] sm:$0xff]
    %v345 = vld [vmem:[#allocation2 + $0x6b0] sm:$0xff]
    %v346 = vld [vmem:[#allocation2 + $0x6b8] sm:$0xff]
    %v347 = vld [vmem:[#allocation2 + $0x6c0] sm:$0xff]
    %v348 = vld [vmem:[#allocation2 + $0x6c8] sm:$0xff]
    %v349 = vld [vmem:[#allocation2 + $0x6d0] sm:$0xff]
    %v350 = vld [vmem:[#allocation2 + $0x6d8] sm:$0xff]
    %v351 = vld [vmem:[#allocation2 + $0x6e0] sm:$0xff]
    %v352 = vld [vmem:[#allocation2 + $0x6e8] sm:$0xff]
    %v353 = vld [vmem:[#allocation2 + $0x6f0] sm:$0xff]
    %v354 = vld [vmem:[#allocation2 + $0x6f8] sm:$0xff]
    %v355 = vld [vmem:[#allocation2 + $0x700] sm:$0xff]
    %v356 = vld [vmem:[#allocation2 + $0x708] sm:$0xff]
    %v357 = vld [vmem:[#allocation2 + $0x710] sm:$0xff]
    %v358 = vld [vmem:[#allocation2 + $0x718] sm:$0xff]
    %v359 = vld [vmem:[#allocation2 + $0x720] sm:$0xff]
    %v360 = vld [vmem:[#allocation2 + $0x728] sm:$0xff]
    %v361 = vld [vmem:[#allocation2 + $0x730] sm:$0xff]
    %v362 = vld [vmem:[#allocation2 + $0x738] sm:$0xff]
    %v363 = vld [vmem:[#allocation2 + $0x740] sm:$0xff]
    %v364 = vld [vmem:[#allocation2 + $0x748] sm:$0xff]
    %v365 = vld [vmem:[#allocation2 + $0x750] sm:$0xff]
    %v366 = vld [vmem:[#allocation2 + $0x758] sm:$0xff]
    %v367 = vld [vmem:[#allocation2 + $0x760] sm:$0xff]
    %v368 = vld [vmem:[#allocation2 + $0x768] sm:$0xff]
    %v369 = vld [vmem:[#allocation2 + $0x770] sm:$0xff]
    %v370 = vld [vmem:[#allocation2 + $0x778] sm:$0xff]
    %v371 = vld [vmem:[#allocation2 + $0x780] sm:$0xff]
    %v372 = vld [vmem:[#allocation2 + $0x788] sm:$0xff]
    %v373 = vld [vmem:[#allocation2 + $0x790] sm:$0xff]
    %v374 = vld [vmem:[#allocation2 + $0x798] sm:$0xff]
    %v375 = vld [vmem:[#allocation2 + $0x7a0] sm:$0xff]
    %v376 = vld [vmem:[#allocation2 + $0x7a8] sm:$0xff]
    %v377 = vld [vmem:[#allocation2 + $0x7b0] sm:$0xff]
    %v378 = vld [vmem:[#allocation2 + $0x7b8] sm:$0xff]
    %v379 = vld [vmem:[#allocation2 + $0x7c0] sm:$0xff]
    %v380 = vld [vmem:[#allocation2 + $0x7c8] sm:$0xff]
    %v381 = vld [vmem:[#allocation2 + $0x7d0] sm:$0xff]
    %v382 = vld [vmem:[#allocation2 + $0x7d8] sm:$0xff]
    %v383 = vld [vmem:[#allocation2 + $0x7e0] sm:$0xff]
    %v384 = vld [vmem:[#allocation2 + $0x7e8] sm:$0xff]
    %v385 = vld [vmem:[#allocation2 + $0x7f0] sm:$0xff]
    %v386 = vld [vmem:[#allocation2 + $0x7f8] sm:$0xff]
    %v387 = vld [vmem:[%s2] sm:$0xf]
    %v389 = vlaneseq
    %v390 = vshrl.u32 %v389, 7
    %v391 = vsub.s32 0, %v390
    %v392 = vrot.slane %v387, %v391
    %v393 = vlaneseq
    %v394 = vshrl.u32 %v393, 7
    %v395 = vsub.s32 1, %v394
    %v396 = vrot.slane %v387, %v395
    %v397 = vlaneseq
    %v398 = vshrl.u32 %v397, 7
    %v399 = vsub.s32 2, %v398
    %v400 = vrot.slane %v387, %v399
    %v401 = vlaneseq
    %v402 = vshrl.u32 %v401, 7
    %v403 = vsub.s32 3, %v402
    %v404 = vrot.slane %v387, %v403
    %v665 = vunpack.c.l.b16 %v131
    %v666 = vunpack.c.h.b16 %v131
    %v667 = vunpack.c.l.b16 %v132
    %v668 = vunpack.c.h.b16 %v132
    %v669 = vunpack.c.l.b16 %v133
    %v670 = vunpack.c.h.b16 %v133
    %v671 = vunpack.c.l.b16 %v134
    %v672 = vunpack.c.h.b16 %v134
    %v673 = vunpack.c.l.b16 %v135
    %v674 = vunpack.c.h.b16 %v135
    %v675 = vunpack.c.l.b16 %v136
    %v676 = vunpack.c.h.b16 %v136
    %v677 = vunpack.c.l.b16 %v137
    %v678 = vunpack.c.h.b16 %v137
    %v679 = vunpack.c.l.b16 %v138
    %v680 = vunpack.c.h.b16 %v138
    %v681 = vunpack.c.l.b16 %v139
    %v682 = vunpack.c.h.b16 %v139
    %v683 = vunpack.c.l.b16 %v140
    %v684 = vunpack.c.h.b16 %v140
    %v685 = vunpack.c.l.b16 %v141
    %v686 = vunpack.c.h.b16 %v141
    %v687 = vunpack.c.l.b16 %v142
    %v688 = vunpack.c.h.b16 %v142
    %v689 = vunpack.c.l.b16 %v143
    %v690 = vunpack.c.h.b16 %v143
    %v691 = vunpack.c.l.b16 %v144
    %v692 = vunpack.c.h.b16 %v144
    %v693 = vunpack.c.l.b16 %v145
    %v694 = vunpack.c.h.b16 %v145
    %v695 = vunpack.c.l.b16 %v146
    %v696 = vunpack.c.h.b16 %v146
    %v697 = vunpack.c.l.b16 %v147
    %v698 = vunpack.c.h.b16 %v147
    %v699 = vunpack.c.l.b16 %v148
    %v700 = vunpack.c.h.b16 %v148
    %v701 = vunpack.c.l.b16 %v149
    %v702 = vunpack.c.h.b16 %v149
    %v703 = vunpack.c.l.b16 %v150
    %v704 = vunpack.c.h.b16 %v150
    %v705 = vunpack.c.l.b16 %v151
    %v706 = vunpack.c.h.b16 %v151
    %v707 = vunpack.c.l.b16 %v152
    %v708 = vunpack.c.h.b16 %v152
    %v709 = vunpack.c.l.b16 %v153
    %v710 = vunpack.c.h.b16 %v153
    %v711 = vunpack.c.l.b16 %v154
    %v712 = vunpack.c.h.b16 %v154
    %v713 = vunpack.c.l.b16 %v155
    %v714 = vunpack.c.h.b16 %v155
    %v715 = vunpack.c.l.b16 %v156
    %v716 = vunpack.c.h.b16 %v156
    %v717 = vunpack.c.l.b16 %v157
    %v718 = vunpack.c.h.b16 %v157
    %v719 = vunpack.c.l.b16 %v158
    %v720 = vunpack.c.h.b16 %v158
    %v721 = vunpack.c.l.b16 %v159
    %v722 = vunpack.c.h.b16 %v159
    %v723 = vunpack.c.l.b16 %v160
    %v724 = vunpack.c.h.b16 %v160
    %v725 = vunpack.c.l.b16 %v161
    %v726 = vunpack.c.h.b16 %v161
    %v727 = vunpack.c.l.b16 %v162
    %v728 = vunpack.c.h.b16 %v162
    %v729 = vunpack.c.l.b16 %v163
    %v730 = vunpack.c.h.b16 %v163
    %v731 = vunpack.c.l.b16 %v164
    %v732 = vunpack.c.h.b16 %v164
    %v733 = vunpack.c.l.b16 %v165
    %v734 = vunpack.c.h.b16 %v165
    %v735 = vunpack.c.l.b16 %v166
    %v736 = vunpack.c.h.b16 %v166
    %v737 = vunpack.c.l.b16 %v167
    %v738 = vunpack.c.h.b16 %v167
    %v739 = vunpack.c.l.b16 %v168
    %v740 = vunpack.c.h.b16 %v168
    %v741 = vunpack.c.l.b16 %v169
    %v742 = vunpack.c.h.b16 %v169
    %v743 = vunpack.c.l.b16 %v170
    %v744 = vunpack.c.h.b16 %v170
    %v745 = vunpack.c.l.b16 %v171
    %v746 = vunpack.c.h.b16 %v171
    %v747 = vunpack.c.l.b16 %v172
    %v748 = vunpack.c.h.b16 %v172
    %v749 = vunpack.c.l.b16 %v173
    %v750 = vunpack.c.h.b16 %v173
    %v751 = vunpack.c.l.b16 %v174
    %v752 = vunpack.c.h.b16 %v174
    %v753 = vunpack.c.l.b16 %v175
    %v754 = vunpack.c.h.b16 %v175
    %v755 = vunpack.c.l.b16 %v176
    %v756 = vunpack.c.h.b16 %v176
    %v757 = vunpack.c.l.b16 %v177
    %v758 = vunpack.c.h.b16 %v177
    %v759 = vunpack.c.l.b16 %v178
    %v760 = vunpack.c.h.b16 %v178
    %v761 = vunpack.c.l.b16 %v179
    %v762 = vunpack.c.h.b16 %v179
    %v763 = vunpack.c.l.b16 %v180
    %v764 = vunpack.c.h.b16 %v180
    %v765 = vunpack.c.l.b16 %v181
    %v766 = vunpack.c.h.b16 %v181
    %v767 = vunpack.c.l.b16 %v182
    %v768 = vunpack.c.h.b16 %v182
    %v769 = vunpack.c.l.b16 %v183
    %v770 = vunpack.c.h.b16 %v183
    %v771 = vunpack.c.l.b16 %v184
    %v772 = vunpack.c.h.b16 %v184
    %v773 = vunpack.c.l.b16 %v185
    %v774 = vunpack.c.h.b16 %v185
    %v775 = vunpack.c.l.b16 %v186
    %v776 = vunpack.c.h.b16 %v186
    %v777 = vunpack.c.l.b16 %v187
    %v778 = vunpack.c.h.b16 %v187
    %v779 = vunpack.c.l.b16 %v188
    %v780 = vunpack.c.h.b16 %v188
    %v781 = vunpack.c.l.b16 %v189
    %v782 = vunpack.c.h.b16 %v189
    %v783 = vunpack.c.l.b16 %v190
    %v784 = vunpack.c.h.b16 %v190
    %v785 = vunpack.c.l.b16 %v191
    %v786 = vunpack.c.h.b16 %v191
    %v787 = vunpack.c.l.b16 %v192
    %v788 = vunpack.c.h.b16 %v192
    %v789 = vunpack.c.l.b16 %v193
    %v790 = vunpack.c.h.b16 %v193
    %v791 = vunpack.c.l.b16 %v194
    %v792 = vunpack.c.h.b16 %v194
    %v793 = vunpack.c.l.b16 %v195
    %v794 = vunpack.c.h.b16 %v195
    %v795 = vunpack.c.l.b16 %v196
    %v796 = vunpack.c.h.b16 %v196
    %v797 = vunpack.c.l.b16 %v197
    %v798 = vunpack.c.h.b16 %v197
    %v799 = vunpack.c.l.b16 %v198
    %v800 = vunpack.c.h.b16 %v198
    %v801 = vunpack.c.l.b16 %v199
    %v802 = vunpack.c.h.b16 %v199
    %v803 = vunpack.c.l.b16 %v200
    %v804 = vunpack.c.h.b16 %v200
    %v805 = vunpack.c.l.b16 %v201
    %v806 = vunpack.c.h.b16 %v201
    %v807 = vunpack.c.l.b16 %v202
    %v808 = vunpack.c.h.b16 %v202
    %v809 = vunpack.c.l.b16 %v203
    %v810 = vunpack.c.h.b16 %v203
    %v811 = vunpack.c.l.b16 %v204
    %v812 = vunpack.c.h.b16 %v204
    %v813 = vunpack.c.l.b16 %v205
    %v814 = vunpack.c.h.b16 %v205
    %v815 = vunpack.c.l.b16 %v206
    %v816 = vunpack.c.h.b16 %v206
    %v817 = vunpack.c.l.b16 %v207
    %v818 = vunpack.c.h.b16 %v207
    %v819 = vunpack.c.l.b16 %v208
    %v820 = vunpack.c.h.b16 %v208
    %v821 = vunpack.c.l.b16 %v209
    %v822 = vunpack.c.h.b16 %v209
    %v823 = vunpack.c.l.b16 %v210
    %v824 = vunpack.c.h.b16 %v210
    %v825 = vunpack.c.l.b16 %v211
    %v826 = vunpack.c.h.b16 %v211
    %v827 = vunpack.c.l.b16 %v212
    %v828 = vunpack.c.h.b16 %v212
    %v829 = vunpack.c.l.b16 %v213
    %v830 = vunpack.c.h.b16 %v213
    %v831 = vunpack.c.l.b16 %v214
    %v832 = vunpack.c.h.b16 %v214
    %v833 = vunpack.c.l.b16 %v215
    %v834 = vunpack.c.h.b16 %v215
    %v835 = vunpack.c.l.b16 %v216
    %v836 = vunpack.c.h.b16 %v216
    %v837 = vunpack.c.l.b16 %v217
    %v838 = vunpack.c.h.b16 %v217
    %v839 = vunpack.c.l.b16 %v218
    %v840 = vunpack.c.h.b16 %v218
    %v841 = vunpack.c.l.b16 %v219
    %v842 = vunpack.c.h.b16 %v219
    %v843 = vunpack.c.l.b16 %v220
    %v844 = vunpack.c.h.b16 %v220
    %v845 = vunpack.c.l.b16 %v221
    %v846 = vunpack.c.h.b16 %v221
    %v847 = vunpack.c.l.b16 %v222
    %v848 = vunpack.c.h.b16 %v222
    %v849 = vunpack.c.l.b16 %v223
    %v850 = vunpack.c.h.b16 %v223
    %v851 = vunpack.c.l.b16 %v224
    %v852 = vunpack.c.h.b16 %v224
    %v853 = vunpack.c.l.b16 %v225
    %v854 = vunpack.c.h.b16 %v225
    %v855 = vunpack.c.l.b16 %v226
    %v856 = vunpack.c.h.b16 %v226
    %v857 = vunpack.c.l.b16 %v227
    %v858 = vunpack.c.h.b16 %v227
    %v859 = vunpack.c.l.b16 %v228
    %v860 = vunpack.c.h.b16 %v228
    %v861 = vunpack.c.l.b16 %v229
    %v862 = vunpack.c.h.b16 %v229
    %v863 = vunpack.c.l.b16 %v230
    %v864 = vunpack.c.h.b16 %v230
    %v865 = vunpack.c.l.b16 %v231
    %v866 = vunpack.c.h.b16 %v231
    %v867 = vunpack.c.l.b16 %v232
    %v868 = vunpack.c.h.b16 %v232
    %v869 = vunpack.c.l.b16 %v233
    %v870 = vunpack.c.h.b16 %v233
    %v871 = vunpack.c.l.b16 %v234
    %v872 = vunpack.c.h.b16 %v234
    %v873 = vunpack.c.l.b16 %v235
    %v874 = vunpack.c.h.b16 %v235
    %v875 = vunpack.c.l.b16 %v236
    %v876 = vunpack.c.h.b16 %v236
    %v877 = vunpack.c.l.b16 %v237
    %v878 = vunpack.c.h.b16 %v237
    %v879 = vunpack.c.l.b16 %v238
    %v880 = vunpack.c.h.b16 %v238
    %v881 = vunpack.c.l.b16 %v239
    %v882 = vunpack.c.h.b16 %v239
    %v883 = vunpack.c.l.b16 %v240
    %v884 = vunpack.c.h.b16 %v240
    %v885 = vunpack.c.l.b16 %v241
    %v886 = vunpack.c.h.b16 %v241
    %v887 = vunpack.c.l.b16 %v242
    %v888 = vunpack.c.h.b16 %v242
    %v889 = vunpack.c.l.b16 %v243
    %v890 = vunpack.c.h.b16 %v243
    %v891 = vunpack.c.l.b16 %v244
    %v892 = vunpack.c.h.b16 %v244
    %v893 = vunpack.c.l.b16 %v245
    %v894 = vunpack.c.h.b16 %v245
    %v895 = vunpack.c.l.b16 %v246
    %v896 = vunpack.c.h.b16 %v246
    %v897 = vunpack.c.l.b16 %v247
    %v898 = vunpack.c.h.b16 %v247
    %v899 = vunpack.c.l.b16 %v248
    %v900 = vunpack.c.h.b16 %v248
    %v901 = vunpack.c.l.b16 %v249
    %v902 = vunpack.c.h.b16 %v249
    %v903 = vunpack.c.l.b16 %v250
    %v904 = vunpack.c.h.b16 %v250
    %v905 = vunpack.c.l.b16 %v251
    %v906 = vunpack.c.h.b16 %v251
    %v907 = vunpack.c.l.b16 %v252
    %v908 = vunpack.c.h.b16 %v252
    %v909 = vunpack.c.l.b16 %v253
    %v910 = vunpack.c.h.b16 %v253
    %v911 = vunpack.c.l.b16 %v254
    %v912 = vunpack.c.h.b16 %v254
    %v913 = vunpack.c.l.b16 %v255
    %v914 = vunpack.c.h.b16 %v255
    %v915 = vunpack.c.l.b16 %v256
    %v916 = vunpack.c.h.b16 %v256
    %v917 = vunpack.c.l.b16 %v257
    %v918 = vunpack.c.h.b16 %v257
    %v919 = vunpack.c.l.b16 %v258
    %v920 = vunpack.c.h.b16 %v258
    %v921 = vunpack.c.l.b16 %v259
    %v922 = vunpack.c.h.b16 %v259
    %v923 = vunpack.c.l.b16 %v260
    %v924 = vunpack.c.h.b16 %v260
    %v925 = vunpack.c.l.b16 %v261
    %v926 = vunpack.c.h.b16 %v261
    %v927 = vunpack.c.l.b16 %v262
    %v928 = vunpack.c.h.b16 %v262
    %v929 = vunpack.c.l.b16 %v263
    %v930 = vunpack.c.h.b16 %v263
    %v931 = vunpack.c.l.b16 %v264
    %v932 = vunpack.c.h.b16 %v264
    %v933 = vunpack.c.l.b16 %v265
    %v934 = vunpack.c.h.b16 %v265
    %v935 = vunpack.c.l.b16 %v266
    %v936 = vunpack.c.h.b16 %v266
    %v937 = vunpack.c.l.b16 %v267
    %v938 = vunpack.c.h.b16 %v267
    %v939 = vunpack.c.l.b16 %v268
    %v940 = vunpack.c.h.b16 %v268
    %v941 = vunpack.c.l.b16 %v269
    %v942 = vunpack.c.h.b16 %v269
    %v943 = vunpack.c.l.b16 %v270
    %v944 = vunpack.c.h.b16 %v270
    %v945 = vunpack.c.l.b16 %v271
    %v946 = vunpack.c.h.b16 %v271
    %v947 = vunpack.c.l.b16 %v272
    %v948 = vunpack.c.h.b16 %v272
    %v949 = vunpack.c.l.b16 %v273
    %v950 = vunpack.c.h.b16 %v273
    %v951 = vunpack.c.l.b16 %v274
    %v952 = vunpack.c.h.b16 %v274
    %v953 = vunpack.c.l.b16 %v275
    %v954 = vunpack.c.h.b16 %v275
    %v955 = vunpack.c.l.b16 %v276
    %v956 = vunpack.c.h.b16 %v276
    %v957 = vunpack.c.l.b16 %v277
    %v958 = vunpack.c.h.b16 %v277
    %v959 = vunpack.c.l.b16 %v278
    %v960 = vunpack.c.h.b16 %v278
    %v961 = vunpack.c.l.b16 %v279
    %v962 = vunpack.c.h.b16 %v279
    %v963 = vunpack.c.l.b16 %v280
    %v964 = vunpack.c.h.b16 %v280
    %v965 = vunpack.c.l.b16 %v281
    %v966 = vunpack.c.h.b16 %v281
    %v967 = vunpack.c.l.b16 %v282
    %v968 = vunpack.c.h.b16 %v282
    %v969 = vunpack.c.l.b16 %v283
    %v970 = vunpack.c.h.b16 %v283
    %v971 = vunpack.c.l.b16 %v284
    %v972 = vunpack.c.h.b16 %v284
    %v973 = vunpack.c.l.b16 %v285
    %v974 = vunpack.c.h.b16 %v285
    %v975 = vunpack.c.l.b16 %v286
    %v976 = vunpack.c.h.b16 %v286
    %v977 = vunpack.c.l.b16 %v287
    %v978 = vunpack.c.h.b16 %v287
    %v979 = vunpack.c.l.b16 %v288
    %v980 = vunpack.c.h.b16 %v288
    %v981 = vunpack.c.l.b16 %v289
    %v982 = vunpack.c.h.b16 %v289
    %v983 = vunpack.c.l.b16 %v290
    %v984 = vunpack.c.h.b16 %v290
    %v985 = vunpack.c.l.b16 %v291
    %v986 = vunpack.c.h.b16 %v291
    %v987 = vunpack.c.l.b16 %v292
    %v988 = vunpack.c.h.b16 %v292
    %v989 = vunpack.c.l.b16 %v293
    %v990 = vunpack.c.h.b16 %v293
    %v991 = vunpack.c.l.b16 %v294
    %v992 = vunpack.c.h.b16 %v294
    %v993 = vunpack.c.l.b16 %v295
    %v994 = vunpack.c.h.b16 %v295
    %v995 = vunpack.c.l.b16 %v296
    %v996 = vunpack.c.h.b16 %v296
    %v997 = vunpack.c.l.b16 %v297
    %v998 = vunpack.c.h.b16 %v297
    %v999 = vunpack.c.l.b16 %v298
    %v1000 = vunpack.c.h.b16 %v298
    %v1001 = vunpack.c.l.b16 %v299
    %v1002 = vunpack.c.h.b16 %v299
    %v1003 = vunpack.c.l.b16 %v300
    %v1004 = vunpack.c.h.b16 %v300
    %v1005 = vunpack.c.l.b16 %v301
    %v1006 = vunpack.c.h.b16 %v301
    %v1007 = vunpack.c.l.b16 %v302
    %v1008 = vunpack.c.h.b16 %v302
    %v1009 = vunpack.c.l.b16 %v303
    %v1010 = vunpack.c.h.b16 %v303
    %v1011 = vunpack.c.l.b16 %v304
    %v1012 = vunpack.c.h.b16 %v304
    %v1013 = vunpack.c.l.b16 %v305
    %v1014 = vunpack.c.h.b16 %v305
    %v1015 = vunpack.c.l.b16 %v306
    %v1016 = vunpack.c.h.b16 %v306
    %v1017 = vunpack.c.l.b16 %v307
    %v1018 = vunpack.c.h.b16 %v307
    %v1019 = vunpack.c.l.b16 %v308
    %v1020 = vunpack.c.h.b16 %v308
    %v1021 = vunpack.c.l.b16 %v309
    %v1022 = vunpack.c.h.b16 %v309
    %v1023 = vunpack.c.l.b16 %v310
    %v1024 = vunpack.c.h.b16 %v310
    %v1025 = vunpack.c.l.b16 %v311
    %v1026 = vunpack.c.h.b16 %v311
    %v1027 = vunpack.c.l.b16 %v312
    %v1028 = vunpack.c.h.b16 %v312
    %v1029 = vunpack.c.l.b16 %v313
    %v1030 = vunpack.c.h.b16 %v313
    %v1031 = vunpack.c.l.b16 %v314
    %v1032 = vunpack.c.h.b16 %v314
    %v1033 = vunpack.c.l.b16 %v315
    %v1034 = vunpack.c.h.b16 %v315
    %v1035 = vunpack.c.l.b16 %v316
    %v1036 = vunpack.c.h.b16 %v316
    %v1037 = vunpack.c.l.b16 %v317
    %v1038 = vunpack.c.h.b16 %v317
    %v1039 = vunpack.c.l.b16 %v318
    %v1040 = vunpack.c.h.b16 %v318
    %v1041 = vunpack.c.l.b16 %v319
    %v1042 = vunpack.c.h.b16 %v319
    %v1043 = vunpack.c.l.b16 %v320
    %v1044 = vunpack.c.h.b16 %v320
    %v1045 = vunpack.c.l.b16 %v321
    %v1046 = vunpack.c.h.b16 %v321
    %v1047 = vunpack.c.l.b16 %v322
    %v1048 = vunpack.c.h.b16 %v322
    %v1049 = vunpack.c.l.b16 %v323
    %v1050 = vunpack.c.h.b16 %v323
    %v1051 = vunpack.c.l.b16 %v324
    %v1052 = vunpack.c.h.b16 %v324
    %v1053 = vunpack.c.l.b16 %v325
    %v1054 = vunpack.c.h.b16 %v325
    %v1055 = vunpack.c.l.b16 %v326
    %v1056 = vunpack.c.h.b16 %v326
    %v1057 = vunpack.c.l.b16 %v327
    %v1058 = vunpack.c.h.b16 %v327
    %v1059 = vunpack.c.l.b16 %v328
    %v1060 = vunpack.c.h.b16 %v328
    %v1061 = vunpack.c.l.b16 %v329
    %v1062 = vunpack.c.h.b16 %v329
    %v1063 = vunpack.c.l.b16 %v330
    %v1064 = vunpack.c.h.b16 %v330
    %v1065 = vunpack.c.l.b16 %v331
    %v1066 = vunpack.c.h.b16 %v331
    %v1067 = vunpack.c.l.b16 %v332
    %v1068 = vunpack.c.h.b16 %v332
    %v1069 = vunpack.c.l.b16 %v333
    %v1070 = vunpack.c.h.b16 %v333
    %v1071 = vunpack.c.l.b16 %v334
    %v1072 = vunpack.c.h.b16 %v334
    %v1073 = vunpack.c.l.b16 %v335
    %v1074 = vunpack.c.h.b16 %v335
    %v1075 = vunpack.c.l.b16 %v336
    %v1076 = vunpack.c.h.b16 %v336
    %v1077 = vunpack.c.l.b16 %v337
    %v1078 = vunpack.c.h.b16 %v337
    %v1079 = vunpack.c.l.b16 %v338
    %v1080 = vunpack.c.h.b16 %v338
    %v1081 = vunpack.c.l.b16 %v339
    %v1082 = vunpack.c.h.b16 %v339
    %v1083 = vunpack.c.l.b16 %v340
    %v1084 = vunpack.c.h.b16 %v340
    %v1085 = vunpack.c.l.b16 %v341
    %v1086 = vunpack.c.h.b16 %v341
    %v1087 = vunpack.c.l.b16 %v342
    %v1088 = vunpack.c.h.b16 %v342
    %v1089 = vunpack.c.l.b16 %v343
    %v1090 = vunpack.c.h.b16 %v343
    %v1091 = vunpack.c.l.b16 %v344
    %v1092 = vunpack.c.h.b16 %v344
    %v1093 = vunpack.c.l.b16 %v345
    %v1094 = vunpack.c.h.b16 %v345
    %v1095 = vunpack.c.l.b16 %v346
    %v1096 = vunpack.c.h.b16 %v346
    %v1097 = vunpack.c.l.b16 %v347
    %v1098 = vunpack.c.h.b16 %v347
    %v1099 = vunpack.c.l.b16 %v348
    %v1100 = vunpack.c.h.b16 %v348
    %v1101 = vunpack.c.l.b16 %v349
    %v1102 = vunpack.c.h.b16 %v349
    %v1103 = vunpack.c.l.b16 %v350
    %v1104 = vunpack.c.h.b16 %v350
    %v1105 = vunpack.c.l.b16 %v351
    %v1106 = vunpack.c.h.b16 %v351
    %v1107 = vunpack.c.l.b16 %v352
    %v1108 = vunpack.c.h.b16 %v352
    %v1109 = vunpack.c.l.b16 %v353
    %v1110 = vunpack.c.h.b16 %v353
    %v1111 = vunpack.c.l.b16 %v354
    %v1112 = vunpack.c.h.b16 %v354
    %v1113 = vunpack.c.l.b16 %v355
    %v1114 = vunpack.c.h.b16 %v355
    %v1115 = vunpack.c.l.b16 %v356
    %v1116 = vunpack.c.h.b16 %v356
    %v1117 = vunpack.c.l.b16 %v357
    %v1118 = vunpack.c.h.b16 %v357
    %v1119 = vunpack.c.l.b16 %v358
    %v1120 = vunpack.c.h.b16 %v358
    %v1121 = vunpack.c.l.b16 %v359
    %v1122 = vunpack.c.h.b16 %v359
    %v1123 = vunpack.c.l.b16 %v360
    %v1124 = vunpack.c.h.b16 %v360
    %v1125 = vunpack.c.l.b16 %v361
    %v1126 = vunpack.c.h.b16 %v361
    %v1127 = vunpack.c.l.b16 %v362
    %v1128 = vunpack.c.h.b16 %v362
    %v1129 = vunpack.c.l.b16 %v363
    %v1130 = vunpack.c.h.b16 %v363
    %v1131 = vunpack.c.l.b16 %v364
    %v1132 = vunpack.c.h.b16 %v364
    %v1133 = vunpack.c.l.b16 %v365
    %v1134 = vunpack.c.h.b16 %v365
    %v1135 = vunpack.c.l.b16 %v366
    %v1136 = vunpack.c.h.b16 %v366
    %v1137 = vunpack.c.l.b16 %v367
    %v1138 = vunpack.c.h.b16 %v367
    %v1139 = vunpack.c.l.b16 %v368
    %v1140 = vunpack.c.h.b16 %v368
    %v1141 = vunpack.c.l.b16 %v369
    %v1142 = vunpack.c.h.b16 %v369
    %v1143 = vunpack.c.l.b16 %v370
    %v1144 = vunpack.c.h.b16 %v370
    %v1145 = vunpack.c.l.b16 %v371
    %v1146 = vunpack.c.h.b16 %v371
    %v1147 = vunpack.c.l.b16 %v372
    %v1148 = vunpack.c.h.b16 %v372
    %v1149 = vunpack.c.l.b16 %v373
    %v1150 = vunpack.c.h.b16 %v373
    %v1151 = vunpack.c.l.b16 %v374
    %v1152 = vunpack.c.h.b16 %v374
    %v1153 = vunpack.c.l.b16 %v375
    %v1154 = vunpack.c.h.b16 %v375
    %v1155 = vunpack.c.l.b16 %v376
    %v1156 = vunpack.c.h.b16 %v376
    %v1157 = vunpack.c.l.b16 %v377
    %v1158 = vunpack.c.h.b16 %v377
    %v1159 = vunpack.c.l.b16 %v378
    %v1160 = vunpack.c.h.b16 %v378
    %v1161 = vunpack.c.l.b16 %v379
    %v1162 = vunpack.c.h.b16 %v379
    %v1163 = vunpack.c.l.b16 %v380
    %v1164 = vunpack.c.h.b16 %v380
    %v1165 = vunpack.c.l.b16 %v381
    %v1166 = vunpack.c.h.b16 %v381
    %v1167 = vunpack.c.l.b16 %v382
    %v1168 = vunpack.c.h.b16 %v382
    %v1169 = vunpack.c.l.b16 %v383
    %v1170 = vunpack.c.h.b16 %v383
    %v1171 = vunpack.c.l.b16 %v384
    %v1172 = vunpack.c.h.b16 %v384
    %v1173 = vunpack.c.l.b16 %v385
    %v1174 = vunpack.c.h.b16 %v385
    %v1175 = vunpack.c.l.b16 %v386
    %v1176 = vunpack.c.h.b16 %v386
    %v1177 = vpack.c.b16 %v669, %v665
    %v1178 = vpack.c.b16 %v670, %v666
    %v1179 = vpack.c.b16 %v671, %v667
    %v1180 = vpack.c.b16 %v672, %v668
    %v1181 = vpack.c.b16 %v677, %v673
    %v1182 = vpack.c.b16 %v678, %v674
    %v1183 = vpack.c.b16 %v679, %v675
    %v1184 = vpack.c.b16 %v680, %v676
    %v1185 = vpack.c.b16 %v685, %v681
    %v1186 = vpack.c.b16 %v686, %v682
    %v1187 = vpack.c.b16 %v687, %v683
    %v1188 = vpack.c.b16 %v688, %v684
    %v1189 = vpack.c.b16 %v693, %v689
    %v1190 = vpack.c.b16 %v694, %v690
    %v1191 = vpack.c.b16 %v695, %v691
    %v1192 = vpack.c.b16 %v696, %v692
    %v1193 = vpack.c.b16 %v701, %v697
    %v1194 = vpack.c.b16 %v702, %v698
    %v1195 = vpack.c.b16 %v703, %v699
    %v1196 = vpack.c.b16 %v704, %v700
    %v1197 = vpack.c.b16 %v709, %v705
    %v1198 = vpack.c.b16 %v710, %v706
    %v1199 = vpack.c.b16 %v711, %v707
    %v1200 = vpack.c.b16 %v712, %v708
    %v1201 = vpack.c.b16 %v717, %v713
    %v1202 = vpack.c.b16 %v718, %v714
    %v1203 = vpack.c.b16 %v719, %v715
    %v1204 = vpack.c.b16 %v720, %v716
    %v1205 = vpack.c.b16 %v725, %v721
    %v1206 = vpack.c.b16 %v726, %v722
    %v1207 = vpack.c.b16 %v727, %v723
    %v1208 = vpack.c.b16 %v728, %v724
    %v1209 = vpack.c.b16 %v733, %v729
    %v1210 = vpack.c.b16 %v734, %v730
    %v1211 = vpack.c.b16 %v735, %v731
    %v1212 = vpack.c.b16 %v736, %v732
    %v1213 = vpack.c.b16 %v741, %v737
    %v1214 = vpack.c.b16 %v742, %v738
    %v1215 = vpack.c.b16 %v743, %v739
    %v1216 = vpack.c.b16 %v744, %v740
    %v1217 = vpack.c.b16 %v749, %v745
    %v1218 = vpack.c.b16 %v750, %v746
    %v1219 = vpack.c.b16 %v751, %v747
    %v1220 = vpack.c.b16 %v752, %v748
    %v1221 = vpack.c.b16 %v757, %v753
    %v1222 = vpack.c.b16 %v758, %v754
    %v1223 = vpack.c.b16 %v759, %v755
    %v1224 = vpack.c.b16 %v760, %v756
    %v1225 = vpack.c.b16 %v765, %v761
    %v1226 = vpack.c.b16 %v766, %v762
    %v1227 = vpack.c.b16 %v767, %v763
    %v1228 = vpack.c.b16 %v768, %v764
    %v1229 = vpack.c.b16 %v773, %v769
    %v1230 = vpack.c.b16 %v774, %v770
    %v1231 = vpack.c.b16 %v775, %v771
    %v1232 = vpack.c.b16 %v776, %v772
    %v1233 = vpack.c.b16 %v781, %v777
    %v1234 = vpack.c.b16 %v782, %v778
    %v1235 = vpack.c.b16 %v783, %v779
    %v1236 = vpack.c.b16 %v784, %v780
    %v1237 = vpack.c.b16 %v789, %v785
    %v1238 = vpack.c.b16 %v790, %v786
    %v1239 = vpack.c.b16 %v791, %v787
    %v1240 = vpack.c.b16 %v792, %v788
    %v1241 = vpack.c.b16 %v797, %v793
    %v1242 = vpack.c.b16 %v798, %v794
    %v1243 = vpack.c.b16 %v799, %v795
    %v1244 = vpack.c.b16 %v800, %v796
    %v1245 = vpack.c.b16 %v805, %v801
    %v1246 = vpack.c.b16 %v806, %v802
    %v1247 = vpack.c.b16 %v807, %v803
    %v1248 = vpack.c.b16 %v808, %v804
    %v1249 = vpack.c.b16 %v813, %v809
    %v1250 = vpack.c.b16 %v814, %v810
    %v1251 = vpack.c.b16 %v815, %v811
    %v1252 = vpack.c.b16 %v816, %v812
    %v1253 = vpack.c.b16 %v821, %v817
    %v1254 = vpack.c.b16 %v822, %v818
    %v1255 = vpack.c.b16 %v823, %v819
    %v1256 = vpack.c.b16 %v824, %v820
    %v1257 = vpack.c.b16 %v829, %v825
    %v1258 = vpack.c.b16 %v830, %v826
    %v1259 = vpack.c.b16 %v831, %v827
    %v1260 = vpack.c.b16 %v832, %v828
    %v1261 = vpack.c.b16 %v837, %v833
    %v1262 = vpack.c.b16 %v838, %v834
    %v1263 = vpack.c.b16 %v839, %v835
    %v1264 = vpack.c.b16 %v840, %v836
    %v1265 = vpack.c.b16 %v845, %v841
    %v1266 = vpack.c.b16 %v846, %v842
    %v1267 = vpack.c.b16 %v847, %v843
    %v1268 = vpack.c.b16 %v848, %v844
    %v1269 = vpack.c.b16 %v853, %v849
    %v1270 = vpack.c.b16 %v854, %v850
    %v1271 = vpack.c.b16 %v855, %v851
    %v1272 = vpack.c.b16 %v856, %v852
    %v1273 = vpack.c.b16 %v861, %v857
    %v1274 = vpack.c.b16 %v862, %v858
    %v1275 = vpack.c.b16 %v863, %v859
    %v1276 = vpack.c.b16 %v864, %v860
    %v1277 = vpack.c.b16 %v869, %v865
    %v1278 = vpack.c.b16 %v870, %v866
    %v1279 = vpack.c.b16 %v871, %v867
    %v1280 = vpack.c.b16 %v872, %v868
    %v1281 = vpack.c.b16 %v877, %v873
    %v1282 = vpack.c.b16 %v878, %v874
    %v1283 = vpack.c.b16 %v879, %v875
    %v1284 = vpack.c.b16 %v880, %v876
    %v1285 = vpack.c.b16 %v885, %v881
    %v1286 = vpack.c.b16 %v886, %v882
    %v1287 = vpack.c.b16 %v887, %v883
    %v1288 = vpack.c.b16 %v888, %v884
    %v1289 = vpack.c.b16 %v893, %v889
    %v1290 = vpack.c.b16 %v894, %v890
    %v1291 = vpack.c.b16 %v895, %v891
    %v1292 = vpack.c.b16 %v896, %v892
    %v1293 = vpack.c.b16 %v901, %v897
    %v1294 = vpack.c.b16 %v902, %v898
    %v1295 = vpack.c.b16 %v903, %v899
    %v1296 = vpack.c.b16 %v904, %v900
    %v1297 = vpack.c.b16 %v909, %v905
    %v1298 = vpack.c.b16 %v910, %v906
    %v1299 = vpack.c.b16 %v911, %v907
    %v1300 = vpack.c.b16 %v912, %v908
    %v1301 = vpack.c.b16 %v917, %v913
    %v1302 = vpack.c.b16 %v918, %v914
    %v1303 = vpack.c.b16 %v919, %v915
    %v1304 = vpack.c.b16 %v920, %v916
    %v1305 = vpack.c.b16 %v925, %v921
    %v1306 = vpack.c.b16 %v926, %v922
    %v1307 = vpack.c.b16 %v927, %v923
    %v1308 = vpack.c.b16 %v928, %v924
    %v1309 = vpack.c.b16 %v933, %v929
    %v1310 = vpack.c.b16 %v934, %v930
    %v1311 = vpack.c.b16 %v935, %v931
    %v1312 = vpack.c.b16 %v936, %v932
    %v1313 = vpack.c.b16 %v941, %v937
    %v1314 = vpack.c.b16 %v942, %v938
    %v1315 = vpack.c.b16 %v943, %v939
    %v1316 = vpack.c.b16 %v944, %v940
    %v1317 = vpack.c.b16 %v949, %v945
    %v1318 = vpack.c.b16 %v950, %v946
    %v1319 = vpack.c.b16 %v951, %v947
    %v1320 = vpack.c.b16 %v952, %v948
    %v1321 = vpack.c.b16 %v957, %v953
    %v1322 = vpack.c.b16 %v958, %v954
    %v1323 = vpack.c.b16 %v959, %v955
    %v1324 = vpack.c.b16 %v960, %v956
    %v1325 = vpack.c.b16 %v965, %v961
    %v1326 = vpack.c.b16 %v966, %v962
    %v1327 = vpack.c.b16 %v967, %v963
    %v1328 = vpack.c.b16 %v968, %v964
    %v1329 = vpack.c.b16 %v973, %v969
    %v1330 = vpack.c.b16 %v974, %v970
    %v1331 = vpack.c.b16 %v975, %v971
    %v1332 = vpack.c.b16 %v976, %v972
    %v1333 = vpack.c.b16 %v981, %v977
    %v1334 = vpack.c.b16 %v982, %v978
    %v1335 = vpack.c.b16 %v983, %v979
    %v1336 = vpack.c.b16 %v984, %v980
    %v1337 = vpack.c.b16 %v989, %v985
    %v1338 = vpack.c.b16 %v990, %v986
    %v1339 = vpack.c.b16 %v991, %v987
    %v1340 = vpack.c.b16 %v992, %v988
    %v1341 = vpack.c.b16 %v997, %v993
    %v1342 = vpack.c.b16 %v998, %v994
    %v1343 = vpack.c.b16 %v999, %v995
    %v1344 = vpack.c.b16 %v1000, %v996
    %v1345 = vpack.c.b16 %v1005, %v1001
    %v1346 = vpack.c.b16 %v1006, %v1002
    %v1347 = vpack.c.b16 %v1007, %v1003
    %v1348 = vpack.c.b16 %v1008, %v1004
    %v1349 = vpack.c.b16 %v1013, %v1009
    %v1350 = vpack.c.b16 %v1014, %v1010
    %v1351 = vpack.c.b16 %v1015, %v1011
    %v1352 = vpack.c.b16 %v1016, %v1012
    %v1353 = vpack.c.b16 %v1021, %v1017
    %v1354 = vpack.c.b16 %v1022, %v1018
    %v1355 = vpack.c.b16 %v1023, %v1019
    %v1356 = vpack.c.b16 %v1024, %v1020
    %v1357 = vpack.c.b16 %v1029, %v1025
    %v1358 = vpack.c.b16 %v1030, %v1026
    %v1359 = vpack.c.b16 %v1031, %v1027
    %v1360 = vpack.c.b16 %v1032, %v1028
    %v1361 = vpack.c.b16 %v1037, %v1033
    %v1362 = vpack.c.b16 %v1038, %v1034
    %v1363 = vpack.c.b16 %v1039, %v1035
    %v1364 = vpack.c.b16 %v1040, %v1036
    %v1365 = vpack.c.b16 %v1045, %v1041
    %v1366 = vpack.c.b16 %v1046, %v1042
    %v1367 = vpack.c.b16 %v1047, %v1043
    %v1368 = vpack.c.b16 %v1048, %v1044
    %v1369 = vpack.c.b16 %v1053, %v1049
    %v1370 = vpack.c.b16 %v1054, %v1050
    %v1371 = vpack.c.b16 %v1055, %v1051
    %v1372 = vpack.c.b16 %v1056, %v1052
    %v1373 = vpack.c.b16 %v1061, %v1057
    %v1374 = vpack.c.b16 %v1062, %v1058
    %v1375 = vpack.c.b16 %v1063, %v1059
    %v1376 = vpack.c.b16 %v1064, %v1060
    %v1377 = vpack.c.b16 %v1069, %v1065
    %v1378 = vpack.c.b16 %v1070, %v1066
    %v1379 = vpack.c.b16 %v1071, %v1067
    %v1380 = vpack.c.b16 %v1072, %v1068
    %v1381 = vpack.c.b16 %v1077, %v1073
    %v1382 = vpack.c.b16 %v1078, %v1074
    %v1383 = vpack.c.b16 %v1079, %v1075
    %v1384 = vpack.c.b16 %v1080, %v1076
    %v1385 = vpack.c.b16 %v1085, %v1081
    %v1386 = vpack.c.b16 %v1086, %v1082
    %v1387 = vpack.c.b16 %v1087, %v1083
    %v1388 = vpack.c.b16 %v1088, %v1084
    %v1389 = vpack.c.b16 %v1093, %v1089
    %v1390 = vpack.c.b16 %v1094, %v1090
    %v1391 = vpack.c.b16 %v1095, %v1091
    %v1392 = vpack.c.b16 %v1096, %v1092
    %v1393 = vpack.c.b16 %v1101, %v1097
    %v1394 = vpack.c.b16 %v1102, %v1098
    %v1395 = vpack.c.b16 %v1103, %v1099
    %v1396 = vpack.c.b16 %v1104, %v1100
    %v1397 = vpack.c.b16 %v1109, %v1105
    %v1398 = vpack.c.b16 %v1110, %v1106
    %v1399 = vpack.c.b16 %v1111, %v1107
    %v1400 = vpack.c.b16 %v1112, %v1108
    %v1401 = vpack.c.b16 %v1117, %v1113
    %v1402 = vpack.c.b16 %v1118, %v1114
    %v1403 = vpack.c.b16 %v1119, %v1115
    %v1404 = vpack.c.b16 %v1120, %v1116
    %v1405 = vpack.c.b16 %v1125, %v1121
    %v1406 = vpack.c.b16 %v1126, %v1122
    %v1407 = vpack.c.b16 %v1127, %v1123
    %v1408 = vpack.c.b16 %v1128, %v1124
    %v1409 = vpack.c.b16 %v1133, %v1129
    %v1410 = vpack.c.b16 %v1134, %v1130
    %v1411 = vpack.c.b16 %v1135, %v1131
    %v1412 = vpack.c.b16 %v1136, %v1132
    %v1413 = vpack.c.b16 %v1141, %v1137
    %v1414 = vpack.c.b16 %v1142, %v1138
    %v1415 = vpack.c.b16 %v1143, %v1139
    %v1416 = vpack.c.b16 %v1144, %v1140
    %v1417 = vpack.c.b16 %v1149, %v1145
    %v1418 = vpack.c.b16 %v1150, %v1146
    %v1419 = vpack.c.b16 %v1151, %v1147
    %v1420 = vpack.c.b16 %v1152, %v1148
    %v1421 = vpack.c.b16 %v1157, %v1153
    %v1422 = vpack.c.b16 %v1158, %v1154
    %v1423 = vpack.c.b16 %v1159, %v1155
    %v1424 = vpack.c.b16 %v1160, %v1156
    %v1425 = vpack.c.b16 %v1165, %v1161
    %v1426 = vpack.c.b16 %v1166, %v1162
    %v1427 = vpack.c.b16 %v1167, %v1163
    %v1428 = vpack.c.b16 %v1168, %v1164
    %v1429 = vpack.c.b16 %v1173, %v1169
    %v1430 = vpack.c.b16 %v1174, %v1170
    %v1431 = vpack.c.b16 %v1175, %v1171
    %v1432 = vpack.c.b16 %v1176, %v1172
    %1689 = vmatprep.subr.bf16.mxu0 %v1178
    %1690 = vmatpush1.bf16.msra.mxu0 %v1177
    %1691 = vmatprep.subr.bf16.mxu0 %v1182
    %1692 = vmatpush1.bf16.msra.mxu0 %v1181
    %1693 = vmatprep.subr.bf16.mxu0 %v1186
    %1694 = vmatpush1.bf16.msra.mxu0 %v1185
    %1695 = vmatprep.subr.bf16.mxu0 %v1190
    %1696 = vmatpush1.bf16.msra.mxu0 %v1189
    %1697 = vmatprep.subr.bf16.mxu0 %v1194
    %1698 = vmatpush1.bf16.msra.mxu0 %v1193
    %1699 = vmatprep.subr.bf16.mxu0 %v1198
    %1700 = vmatpush1.bf16.msra.mxu0 %v1197
    %1701 = vmatprep.subr.bf16.mxu0 %v1202
    %1702 = vmatpush1.bf16.msra.mxu0 %v1201
    %1703 = vmatprep.subr.bf16.mxu0 %v1206
    %1704 = vmatpush1.bf16.msra.mxu0 %v1205
    %1705 = vmatprep.subr.bf16.mxu0 %v1210
    %1706 = vmatpush1.bf16.msra.mxu0 %v1209
    %1707 = vmatprep.subr.bf16.mxu0 %v1214
    %1708 = vmatpush1.bf16.msra.mxu0 %v1213
    %1709 = vmatprep.subr.bf16.mxu0 %v1218
    %1710 = vmatpush1.bf16.msra.mxu0 %v1217
    %1711 = vmatprep.subr.bf16.mxu0 %v1222
    %1712 = vmatpush1.bf16.msra.mxu0 %v1221
    %1713 = vmatprep.subr.bf16.mxu0 %v1226
    %1714 = vmatpush1.bf16.msra.mxu0 %v1225
    %1715 = vmatprep.subr.bf16.mxu0 %v1230
    %1716 = vmatpush1.bf16.msra.mxu0 %v1229
    %1717 = vmatprep.subr.bf16.mxu0 %v1234
    %1718 = vmatpush1.bf16.msra.mxu0 %v1233
    %1719 = vmatprep.subr.bf16.mxu0 %v1238
    %1720 = vmatpush1.bf16.msra.mxu0 %v1237
    %1721 = vmatprep.mubr.bf16.mxu0 %v124
    %1722 = vmatmul.mubr.bf16.gmra.mrb[0].mxu0 %v123
    %v1723 = vpop.f32.mrb[0].mxu0
    %v1724 = vadd.f32 %v392, %v1723
    %v1725 = vpop.f32.mrb[0].mxu0
    %v1726 = vadd.f32 %v396, %v1725
    %v1727 = vpop.f32.mrb[0].mxu0
    %v1728 = vpop.f32.mrb[0].mxu0
    %1729 = vdwg.mxu0
    %1730 = vmatprep.subr.bf16.mxu0 %v1242
    %1731 = vmatpush1.bf16.msra.mxu0 %v1241
    %1732 = vmatprep.subr.bf16.mxu0 %v1246
    %1733 = vmatpush1.bf16.msra.mxu0 %v1245
    %1734 = vmatprep.subr.bf16.mxu0 %v1250
    %1735 = vmatpush1.bf16.msra.mxu0 %v1249
    %1736 = vmatprep.subr.bf16.mxu0 %v1254
    %1737 = vmatpush1.bf16.msra.mxu0 %v1253
    %1738 = vmatprep.subr.bf16.mxu0 %v1258
    %1739 = vmatpush1.bf16.msra.mxu0 %v1257
    %1740 = vmatprep.subr.bf16.mxu0 %v1262
    %1741 = vmatpush1.bf16.msra.mxu0 %v1261
    %1742 = vmatprep.subr.bf16.mxu0 %v1266
    %1743 = vmatpush1.bf16.msra.mxu0 %v1265
    %1744 = vmatprep.subr.bf16.mxu0 %v1270
    %1745 = vmatpush1.bf16.msra.mxu0 %v1269
    %1746 = vmatprep.subr.bf16.mxu0 %v1274
    %1747 = vmatpush1.bf16.msra.mxu0 %v1273
    %1748 = vmatprep.subr.bf16.mxu0 %v1278
    %1749 = vmatpush1.bf16.msra.mxu0 %v1277
    %1750 = vmatprep.subr.bf16.mxu0 %v1282
    %1751 = vmatpush1.bf16.msra.mxu0 %v1281
    %1752 = vmatprep.subr.bf16.mxu0 %v1286
    %1753 = vmatpush1.bf16.msra.mxu0 %v1285
    %1754 = vmatprep.subr.bf16.mxu0 %v1290
    %1755 = vmatpush1.bf16.msra.mxu0 %v1289
    %1756 = vmatprep.subr.bf16.mxu0 %v1294
    %1757 = vmatpush1.bf16.msra.mxu0 %v1293
    %1758 = vmatprep.subr.bf16.mxu0 %v1298
    %1759 = vmatpush1.bf16.msra.mxu0 %v1297
    %1760 = vmatprep.subr.bf16.mxu0 %v1302
    %1761 = vmatpush1.bf16.msra.mxu0 %v1301
    %1762 = vmatprep.mubr.bf16.mxu0 %v126
    %1763 = vmatmul.mubr.bf16.gmra.mrb[0].mxu0 %v125
    %v1764 = vpop.f32.mrb[0].mxu0
    %v1765 = vadd.f32 %v1724, %v1764
    %v1766 = vpop.f32.mrb[0].mxu0
    %v1767 = vadd.f32 %v1726, %v1766
    %v1768 = vpop.f32.mrb[0].mxu0
    %v1769 = vpop.f32.mrb[0].mxu0
    %1770 = vdwg.mxu0
    %1771 = vmatprep.subr.bf16.mxu0 %v1306
    %1772 = vmatpush1.bf16.msra.mxu0 %v1305
    %1773 = vmatprep.subr.bf16.mxu0 %v1310
    %1774 = vmatpush1.bf16.msra.mxu0 %v1309
    %1775 = vmatprep.subr.bf16.mxu0 %v1314
    %1776 = vmatpush1.bf16.msra.mxu0 %v1313
    %1777 = vmatprep.subr.bf16.mxu0 %v1318
    %1778 = vmatpush1.bf16.msra.mxu0 %v1317
    %1779 = vmatprep.subr.bf16.mxu0 %v1322
    %1780 = vmatpush1.bf16.msra.mxu0 %v1321
    %1781 = vmatprep.subr.bf16.mxu0 %v1326
    %1782 = vmatpush1.bf16.msra.mxu0 %v1325
    %1783 = vmatprep.subr.bf16.mxu0 %v1330
    %1784 = vmatpush1.bf16.msra.mxu0 %v1329
    %1785 = vmatprep.subr.bf16.mxu0 %v1334
    %1786 = vmatpush1.bf16.msra.mxu0 %v1333
    %1787 = vmatprep.subr.bf16.mxu0 %v1338
    %1788 = vmatpush1.bf16.msra.mxu0 %v1337
    %1789 = vmatprep.subr.bf16.mxu0 %v1342
    %1790 = vmatpush1.bf16.msra.mxu0 %v1341
    %1791 = vmatprep.subr.bf16.mxu0 %v1346
    %1792 = vmatpush1.bf16.msra.mxu0 %v1345
    %1793 = vmatprep.subr.bf16.mxu0 %v1350
    %1794 = vmatpush1.bf16.msra.mxu0 %v1349
    %1795 = vmatprep.subr.bf16.mxu0 %v1354
    %1796 = vmatpush1.bf16.msra.mxu0 %v1353
    %1797 = vmatprep.subr.bf16.mxu0 %v1358
    %1798 = vmatpush1.bf16.msra.mxu0 %v1357
    %1799 = vmatprep.subr.bf16.mxu0 %v1362
    %1800 = vmatpush1.bf16.msra.mxu0 %v1361
    %1801 = vmatprep.subr.bf16.mxu0 %v1366
    %1802 = vmatpush1.bf16.msra.mxu0 %v1365
    %1803 = vmatprep.mubr.bf16.mxu0 %v128
    %1804 = vmatmul.mubr.bf16.gmra.mrb[0].mxu0 %v127
    %v1805 = vpop.f32.mrb[0].mxu0
    %v1806 = vadd.f32 %v1765, %v1805
    %v1807 = vpop.f32.mrb[0].mxu0
    %v1808 = vadd.f32 %v1767, %v1807
    %v1809 = vpop.f32.mrb[0].mxu0
    %v1810 = vpop.f32.mrb[0].mxu0
    %1811 = vdwg.mxu0
    %1812 = vmatprep.subr.bf16.mxu0 %v1370
    %1813 = vmatpush1.bf16.msra.mxu0 %v1369
    %1814 = vmatprep.subr.bf16.mxu0 %v1374
    %1815 = vmatpush1.bf16.msra.mxu0 %v1373
    %1816 = vmatprep.subr.bf16.mxu0 %v1378
    %1817 = vmatpush1.bf16.msra.mxu0 %v1377
    %1818 = vmatprep.subr.bf16.mxu0 %v1382
    %1819 = vmatpush1.bf16.msra.mxu0 %v1381
    %1820 = vmatprep.subr.bf16.mxu0 %v1386
    %1821 = vmatpush1.bf16.msra.mxu0 %v1385
    %1822 = vmatprep.subr.bf16.mxu0 %v1390
    %1823 = vmatpush1.bf16.msra.mxu0 %v1389
    %1824 = vmatprep.subr.bf16.mxu0 %v1394
    %1825 = vmatpush1.bf16.msra.mxu0 %v1393
    %1826 = vmatprep.subr.bf16.mxu0 %v1398
    %1827 = vmatpush1.bf16.msra.mxu0 %v1397
    %1828 = vmatprep.subr.bf16.mxu0 %v1402
    %1829 = vmatpush1.bf16.msra.mxu0 %v1401
    %1830 = vmatprep.subr.bf16.mxu0 %v1406
    %1831 = vmatpush1.bf16.msra.mxu0 %v1405
    %1832 = vmatprep.subr.bf16.mxu0 %v1410
    %1833 = vmatpush1.bf16.msra.mxu0 %v1409
    %1834 = vmatprep.subr.bf16.mxu0 %v1414
    %1835 = vmatpush1.bf16.msra.mxu0 %v1413
    %1836 = vmatprep.subr.bf16.mxu0 %v1418
    %1837 = vmatpush1.bf16.msra.mxu0 %v1417
    %1838 = vmatprep.subr.bf16.mxu0 %v1422
    %1839 = vmatpush1.bf16.msra.mxu0 %v1421
    %1840 = vmatprep.subr.bf16.mxu0 %v1426
    %1841 = vmatpush1.bf16.msra.mxu0 %v1425
    %1842 = vmatprep.subr.bf16.mxu0 %v1430
    %1843 = vmatpush1.bf16.msra.mxu0 %v1429
    %1844 = vmatprep.mubr.bf16.mxu0 %v130
    %1845 = vmatmul.mubr.bf16.gmra.mrb[0].mxu0 %v129
    %v1846 = vpop.f32.mrb[0].mxu0
    %v1847 = vadd.f32 %v1806, %v1846
    %v1848 = vpop.f32.mrb[0].mxu0
    %v1849 = vadd.f32 %v1808, %v1848
    %v1850 = vpop.f32.mrb[0].mxu0
    %v1851 = vpop.f32.mrb[0].mxu0
    %1852 = vdwg.mxu0
    %1853 = vmatprep.subr.bf16.mxu0 %v1180
    %1854 = vmatpush1.bf16.msra.mxu0 %v1179
    %1855 = vmatprep.subr.bf16.mxu0 %v1184
    %1856 = vmatpush1.bf16.msra.mxu0 %v1183
    %1857 = vmatprep.subr.bf16.mxu0 %v1188
    %1858 = vmatpush1.bf16.msra.mxu0 %v1187
    %1859 = vmatprep.subr.bf16.mxu0 %v1192
    %1860 = vmatpush1.bf16.msra.mxu0 %v1191
    %1861 = vmatprep.subr.bf16.mxu0 %v1196
    %1862 = vmatpush1.bf16.msra.mxu0 %v1195
    %1863 = vmatprep.subr.bf16.mxu0 %v1200
    %1864 = vmatpush1.bf16.msra.mxu0 %v1199
    %1865 = vmatprep.subr.bf16.mxu0 %v1204
    %1866 = vmatpush1.bf16.msra.mxu0 %v1203
    %1867 = vmatprep.subr.bf16.mxu0 %v1208
    %1868 = vmatpush1.bf16.msra.mxu0 %v1207
    %1869 = vmatprep.subr.bf16.mxu0 %v1212
    %1870 = vmatpush1.bf16.msra.mxu0 %v1211
    %1871 = vmatprep.subr.bf16.mxu0 %v1216
    %1872 = vmatpush1.bf16.msra.mxu0 %v1215
    %1873 = vmatprep.subr.bf16.mxu0 %v1220
    %1874 = vmatpush1.bf16.msra.mxu0 %v1219
    %1875 = vmatprep.subr.bf16.mxu0 %v1224
    %1876 = vmatpush1.bf16.msra.mxu0 %v1223
    %1877 = vmatprep.subr.bf16.mxu0 %v1228
    %1878 = vmatpush1.bf16.msra.mxu0 %v1227
    %1879 = vmatprep.subr.bf16.mxu0 %v1232
    %1880 = vmatpush1.bf16.msra.mxu0 %v1231
    %1881 = vmatprep.subr.bf16.mxu0 %v1236
    %1882 = vmatpush1.bf16.msra.mxu0 %v1235
    %1883 = vmatprep.subr.bf16.mxu0 %v1240
    %1884 = vmatpush1.bf16.msra.mxu0 %v1239
    %1885 = vmatprep.mubr.bf16.mxu0 %v124
    %1886 = vmatmul.mubr.bf16.gmra.mrb[0].mxu0 %v123
    %v1887 = vpop.f32.mrb[0].mxu0
    %v1888 = vadd.f32 %v400, %v1887
    %v1889 = vpop.f32.mrb[0].mxu0
    %v1890 = vadd.f32 %v404, %v1889
    %v1891 = vpop.f32.mrb[0].mxu0
    %v1892 = vpop.f32.mrb[0].mxu0
    %1893 = vdwg.mxu0
    %1894 = vmatprep.subr.bf16.mxu0 %v1244
    %1895 = vmatpush1.bf16.msra.mxu0 %v1243
    %1896 = vmatprep.subr.bf16.mxu0 %v1248
    %1897 = vmatpush1.bf16.msra.mxu0 %v1247
    %1898 = vmatprep.subr.bf16.mxu0 %v1252
    %1899 = vmatpush1.bf16.msra.mxu0 %v1251
    %1900 = vmatprep.subr.bf16.mxu0 %v1256
    %1901 = vmatpush1.bf16.msra.mxu0 %v1255
    %1902 = vmatprep.subr.bf16.mxu0 %v1260
    %1903 = vmatpush1.bf16.msra.mxu0 %v1259
    %1904 = vmatprep.subr.bf16.mxu0 %v1264
    %1905 = vmatpush1.bf16.msra.mxu0 %v1263
    %1906 = vmatprep.subr.bf16.mxu0 %v1268
    %1907 = vmatpush1.bf16.msra.mxu0 %v1267
    %1908 = vmatprep.subr.bf16.mxu0 %v1272
    %1909 = vmatpush1.bf16.msra.mxu0 %v1271
    %1910 = vmatprep.subr.bf16.mxu0 %v1276
    %1911 = vmatpush1.bf16.msra.mxu0 %v1275
    %1912 = vmatprep.subr.bf16.mxu0 %v1280
    %1913 = vmatpush1.bf16.msra.mxu0 %v1279
    %1914 = vmatprep.subr.bf16.mxu0 %v1284
    %1915 = vmatpush1.bf16.msra.mxu0 %v1283
    %1916 = vmatprep.subr.bf16.mxu0 %v1288
    %1917 = vmatpush1.bf16.msra.mxu0 %v1287
    %1918 = vmatprep.subr.bf16.mxu0 %v1292
    %1919 = vmatpush1.bf16.msra.mxu0 %v1291
    %1920 = vmatprep.subr.bf16.mxu0 %v1296
    %1921 = vmatpush1.bf16.msra.mxu0 %v1295
    %1922 = vmatprep.subr.bf16.mxu0 %v1300
    %1923 = vmatpush1.bf16.msra.mxu0 %v1299
    %1924 = vmatprep.subr.bf16.mxu0 %v1304
    %1925 = vmatpush1.bf16.msra.mxu0 %v1303
    %1926 = vmatprep.mubr.bf16.mxu0 %v126
    %1927 = vmatmul.mubr.bf16.gmra.mrb[0].mxu0 %v125
    %v1928 = vpop.f32.mrb[0].mxu0
    %v1929 = vadd.f32 %v1888, %v1928
    %v1930 = vpop.f32.mrb[0].mxu0
    %v1931 = vadd.f32 %v1890, %v1930
    %v1932 = vpop.f32.mrb[0].mxu0
    %v1933 = vpop.f32.mrb[0].mxu0
    %1934 = vdwg.mxu0
    %1935 = vmatprep.subr.bf16.mxu0 %v1308
    %1936 = vmatpush1.bf16.msra.mxu0 %v1307
    %1937 = vmatprep.subr.bf16.mxu0 %v1312
    %1938 = vmatpush1.bf16.msra.mxu0 %v1311
    %1939 = vmatprep.subr.bf16.mxu0 %v1316
    %1940 = vmatpush1.bf16.msra.mxu0 %v1315
    %1941 = vmatprep.subr.bf16.mxu0 %v1320
    %1942 = vmatpush1.bf16.msra.mxu0 %v1319
    %1943 = vmatprep.subr.bf16.mxu0 %v1324
    %1944 = vmatpush1.bf16.msra.mxu0 %v1323
    %1945 = vmatprep.subr.bf16.mxu0 %v1328
    %1946 = vmatpush1.bf16.msra.mxu0 %v1327
    %1947 = vmatprep.subr.bf16.mxu0 %v1332
    %1948 = vmatpush1.bf16.msra.mxu0 %v1331
    %1949 = vmatprep.subr.bf16.mxu0 %v1336
    %1950 = vmatpush1.bf16.msra.mxu0 %v1335
    %1951 = vmatprep.subr.bf16.mxu0 %v1340
    %1952 = vmatpush1.bf16.msra.mxu0 %v1339
    %1953 = vmatprep.subr.bf16.mxu0 %v1344
    %1954 = vmatpush1.bf16.msra.mxu0 %v1343
    %1955 = vmatprep.subr.bf16.mxu0 %v1348
    %1956 = vmatpush1.bf16.msra.mxu0 %v1347
    %1957 = vmatprep.subr.bf16.mxu0 %v1352
    %1958 = vmatpush1.bf16.msra.mxu0 %v1351
    %1959 = vmatprep.subr.bf16.mxu0 %v1356
    %1960 = vmatpush1.bf16.msra.mxu0 %v1355
    %1961 = vmatprep.subr.bf16.mxu0 %v1360
    %1962 = vmatpush1.bf16.msra.mxu0 %v1359
    %1963 = vmatprep.subr.bf16.mxu0 %v1364
    %1964 = vmatpush1.bf16.msra.mxu0 %v1363
    %1965 = vmatprep.subr.bf16.mxu0 %v1368
    %1966 = vmatpush1.bf16.msra.mxu0 %v1367
    %1967 = vmatprep.mubr.bf16.mxu0 %v128
    %1968 = vmatmul.mubr.bf16.gmra.mrb[0].mxu0 %v127
    %v1969 = vpop.f32.mrb[0].mxu0
    %v1970 = vadd.f32 %v1929, %v1969
    %v1971 = vpop.f32.mrb[0].mxu0
    %v1972 = vadd.f32 %v1931, %v1971
    %v1973 = vpop.f32.mrb[0].mxu0
    %v1974 = vpop.f32.mrb[0].mxu0
    %1975 = vdwg.mxu0
    %1976 = vmatprep.subr.bf16.mxu0 %v1372
    %1977 = vmatpush1.bf16.msra.mxu0 %v1371
    %1978 = vmatprep.subr.bf16.mxu0 %v1376
    %1979 = vmatpush1.bf16.msra.mxu0 %v1375
    %1980 = vmatprep.subr.bf16.mxu0 %v1380
    %1981 = vmatpush1.bf16.msra.mxu0 %v1379
    %1982 = vmatprep.subr.bf16.mxu0 %v1384
    %1983 = vmatpush1.bf16.msra.mxu0 %v1383
    %1984 = vmatprep.subr.bf16.mxu0 %v1388
    %1985 = vmatpush1.bf16.msra.mxu0 %v1387
    %1986 = vmatprep.subr.bf16.mxu0 %v1392
    %1987 = vmatpush1.bf16.msra.mxu0 %v1391
    %1988 = vmatprep.subr.bf16.mxu0 %v1396
    %1989 = vmatpush1.bf16.msra.mxu0 %v1395
    %1990 = vmatprep.subr.bf16.mxu0 %v1400
    %1991 = vmatpush1.bf16.msra.mxu0 %v1399
    %1992 = vmatprep.subr.bf16.mxu0 %v1404
    %1993 = vmatpush1.bf16.msra.mxu0 %v1403
    %1994 = vmatprep.subr.bf16.mxu0 %v1408
    %1995 = vmatpush1.bf16.msra.mxu0 %v1407
    %1996 = vmatprep.subr.bf16.mxu0 %v1412
    %1997 = vmatpush1.bf16.msra.mxu0 %v1411
    %1998 = vmatprep.subr.bf16.mxu0 %v1416
    %1999 = vmatpush1.bf16.msra.mxu0 %v1415
    %2000 = vmatprep.subr.bf16.mxu0 %v1420
    %2001 = vmatpush1.bf16.msra.mxu0 %v1419
    %2002 = vmatprep.subr.bf16.mxu0 %v1424
    %2003 = vmatpush1.bf16.msra.mxu0 %v1423
    %2004 = vmatprep.subr.bf16.mxu0 %v1428
    %2005 = vmatpush1.bf16.msra.mxu0 %v1427
    %2006 = vmatprep.subr.bf16.mxu0 %v1432
    %2007 = vmatpush1.bf16.msra.mxu0 %v1431
    %2008 = vmatprep.mubr.bf16.mxu0 %v130
    %2009 = vmatmul.mubr.bf16.gmra.mrb[0].mxu0 %v129
    %v2010 = vpop.f32.mrb[0].mxu0
    %v2011 = vadd.f32 %v1970, %v2010
    %v2012 = vpop.f32.mrb[0].mxu0
    %v2013 = vadd.f32 %v1972, %v2012
    %v2014 = vpop.f32.mrb[0].mxu0
    %v2015 = vpop.f32.mrb[0].mxu0
    %2016 = vdwg.mxu0
    %v2021 = vcombine.low %v1847, %v1849
    %v2022 = vcombine.low %v2011, %v2013
    %v2024 = vunpack.c.l.s4 1983009808
    %v2025 = vunpack.c.0.s8 %v2024
    %v2026 = vlaneseq
    %v2027 = vshrl.u32 %v2026, 7
    %v2028 = vsub.s32 %v2025, %v2027
    %v2029 = vrot.slane %v2021, %v2028
    %v2031 = vunpack.c.l.s4 1983009808
    %v2032 = vunpack.c.0.s8 %v2031
    %v2033 = vlaneseq
    %v2034 = vshrl.u32 %v2033, 7
    %v2035 = vsub.s32 %v2032, %v2034
    %v2036 = vrot.slane %v2022, %v2035
    %v2037 = vcombine.low %v2029, %v2036
    %2039 = vst [vmem:[#allocation8] sm:$0xff] %v2037
    %v2040 = vld [vmem:[#allocation5] sm:$0xff]
    %v2041 = vld [vmem:[#allocation5 + $0x8] sm:$0xff]
    %v2042 = vld [vmem:[#allocation5 + $0x10] sm:$0xff]
    %v2043 = vld [vmem:[#allocation5 + $0x18] sm:$0xff]
    %v2044 = vld [vmem:[#allocation5 + $0x20] sm:$0xff]
    %v2045 = vld [vmem:[#allocation5 + $0x28] sm:$0xff]
    %v2046 = vld [vmem:[#allocation5 + $0x30] sm:$0xff]
    %v2047 = vld [vmem:[#allocation5 + $0x38] sm:$0xff]
    %v2048 = vld [vmem:[#allocation5 + $0x40] sm:$0xff]
    %v2049 = vld [vmem:[#allocation5 + $0x48] sm:$0xff]
    %v2050 = vld [vmem:[#allocation5 + $0x50] sm:$0xff]
    %v2051 = vld [vmem:[#allocation5 + $0x58] sm:$0xff]
    %v2052 = vld [vmem:[#allocation5 + $0x60] sm:$0xff]
    %v2053 = vld [vmem:[#allocation5 + $0x68] sm:$0xff]
    %v2054 = vld [vmem:[#allocation5 + $0x70] sm:$0xff]
    %v2055 = vld [vmem:[#allocation5 + $0x78] sm:$0xff]
    %v2056 = vld [vmem:[#allocation5 + $0x80] sm:$0xff]
    %v2057 = vld [vmem:[#allocation5 + $0x88] sm:$0xff]
    %v2058 = vld [vmem:[#allocation5 + $0x90] sm:$0xff]
    %v2059 = vld [vmem:[#allocation5 + $0x98] sm:$0xff]
    %v2060 = vld [vmem:[#allocation5 + $0xa0] sm:$0xff]
    %v2061 = vld [vmem:[#allocation5 + $0xa8] sm:$0xff]
    %v2062 = vld [vmem:[#allocation5 + $0xb0] sm:$0xff]
    %v2063 = vld [vmem:[#allocation5 + $0xb8] sm:$0xff]
    %v2064 = vld [vmem:[#allocation5 + $0xc0] sm:$0xff]
    %v2065 = vld [vmem:[#allocation5 + $0xc8] sm:$0xff]
    %v2066 = vld [vmem:[#allocation5 + $0xd0] sm:$0xff]
    %v2067 = vld [vmem:[#allocation5 + $0xd8] sm:$0xff]
    %v2068 = vld [vmem:[#allocation5 + $0xe0] sm:$0xff]
    %v2069 = vld [vmem:[#allocation5 + $0xe8] sm:$0xff]
    %v2070 = vld [vmem:[#allocation5 + $0xf0] sm:$0xff]
    %v2071 = vld [vmem:[#allocation5 + $0xf8] sm:$0xff]
    %v2072 = vld [vmem:[#allocation5 + $0x100] sm:$0xff]
    %v2073 = vld [vmem:[#allocation5 + $0x108] sm:$0xff]
    %v2074 = vld [vmem:[#allocation5 + $0x110] sm:$0xff]
    %v2075 = vld [vmem:[#allocation5 + $0x118] sm:$0xff]
    %v2076 = vld [vmem:[#allocation5 + $0x120] sm:$0xff]
    %v2077 = vld [vmem:[#allocation5 + $0x128] sm:$0xff]
    %v2078 = vld [vmem:[#allocation5 + $0x130] sm:$0xff]
    %v2079 = vld [vmem:[#allocation5 + $0x138] sm:$0xff]
    %v2080 = vld [vmem:[#allocation5 + $0x140] sm:$0xff]
    %v2081 = vld [vmem:[#allocation5 + $0x148] sm:$0xff]
    %v2082 = vld [vmem:[#allocation5 + $0x150] sm:$0xff]
    %v2083 = vld [vmem:[#allocation5 + $0x158] sm:$0xff]
    %v2084 = vld [vmem:[#allocation5 + $0x160] sm:$0xff]
    %v2085 = vld [vmem:[#allocation5 + $0x168] sm:$0xff]
    %v2086 = vld [vmem:[#allocation5 + $0x170] sm:$0xff]
    %v2087 = vld [vmem:[#allocation5 + $0x178] sm:$0xff]
    %v2088 = vld [vmem:[#allocation5 + $0x180] sm:$0xff]
    %v2089 = vld [vmem:[#allocation5 + $0x188] sm:$0xff]
    %v2090 = vld [vmem:[#allocation5 + $0x190] sm:$0xff]
    %v2091 = vld [vmem:[#allocation5 + $0x198] sm:$0xff]
    %v2092 = vld [vmem:[#allocation5 + $0x1a0] sm:$0xff]
    %v2093 = vld [vmem:[#allocation5 + $0x1a8] sm:$0xff]
    %v2094 = vld [vmem:[#allocation5 + $0x1b0] sm:$0xff]
    %v2095 = vld [vmem:[#allocation5 + $0x1b8] sm:$0xff]
    %v2096 = vld [vmem:[#allocation5 + $0x1c0] sm:$0xff]
    %v2097 = vld [vmem:[#allocation5 + $0x1c8] sm:$0xff]
    %v2098 = vld [vmem:[#allocation5 + $0x1d0] sm:$0xff]
    %v2099 = vld [vmem:[#allocation5 + $0x1d8] sm:$0xff]
    %v2100 = vld [vmem:[#allocation5 + $0x1e0] sm:$0xff]
    %v2101 = vld [vmem:[#allocation5 + $0x1e8] sm:$0xff]
    %v2102 = vld [vmem:[#allocation5 + $0x1f0] sm:$0xff]
    %v2103 = vld [vmem:[#allocation5 + $0x1f8] sm:$0xff]
    %v2104 = vld [vmem:[%s4] sm:$0x1]
    %v2106 = vlaneseq
    %v2107 = vshrl.u32 %v2106, 7
    %v2108 = vsub.s32 0, %v2107
    %v2109 = vrot.slane %v2104, %v2108
    %2111 = vmatprep.subr.mxu0 0.0
    %2112 = vmatpush1.msra.mxu0 %v2040
    %2113 = vmatprep.subr.mxu0 0.0
    %2114 = vmatpush1.msra.mxu0 %v2041
    %2115 = vmatprep.subr.mxu0 0.0
    %2116 = vmatpush1.msra.mxu0 %v2042
    %2117 = vmatprep.subr.mxu0 0.0
    %2118 = vmatpush1.msra.mxu0 %v2043
    %2119 = vmatprep.subr.mxu0 0.0
    %2120 = vmatpush1.msra.mxu0 %v2044
    %2121 = vmatprep.subr.mxu0 0.0
    %2122 = vmatpush1.msra.mxu0 %v2045
    %2123 = vmatprep.subr.mxu0 0.0
    %2124 = vmatpush1.msra.mxu0 %v2046
    %2125 = vmatprep.subr.mxu0 0.0
    %2126 = vmatpush1.msra.mxu0 %v2047
    %2127 = vmatprep.subr.mxu0 0.0
    %2128 = vmatpush1.msra.mxu0 %v2048
    %2129 = vmatprep.subr.mxu0 0.0
    %2130 = vmatpush1.msra.mxu0 %v2049
    %2131 = vmatprep.subr.mxu0 0.0
    %2132 = vmatpush1.msra.mxu0 %v2050
    %2133 = vmatprep.subr.mxu0 0.0
    %2134 = vmatpush1.msra.mxu0 %v2051
    %2135 = vmatprep.subr.mxu0 0.0
    %2136 = vmatpush1.msra.mxu0 %v2052
    %2137 = vmatprep.subr.mxu0 0.0
    %2138 = vmatpush1.msra.mxu0 %v2053
    %2139 = vmatprep.subr.mxu0 0.0
    %2140 = vmatpush1.msra.mxu0 %v2054
    %2141 = vmatprep.subr.mxu0 0.0
    %2142 = vmatpush1.msra.mxu0 %v2055
    %2143 = vmatprep.subr.mxu0 0.0
    %2144 = vmatpush1.msra.mxu0 %v2056
    %2145 = vmatprep.subr.mxu0 0.0
    %2146 = vmatpush1.msra.mxu0 %v2057
    %2147 = vmatprep.subr.mxu0 0.0
    %2148 = vmatpush1.msra.mxu0 %v2058
    %2149 = vmatprep.subr.mxu0 0.0
    %2150 = vmatpush1.msra.mxu0 %v2059
    %2151 = vmatprep.subr.mxu0 0.0
    %2152 = vmatpush1.msra.mxu0 %v2060
    %2153 = vmatprep.subr.mxu0 0.0
    %2154 = vmatpush1.msra.mxu0 %v2061
    %2155 = vmatprep.subr.mxu0 0.0
    %2156 = vmatpush1.msra.mxu0 %v2062
    %2157 = vmatprep.subr.mxu0 0.0
    %2158 = vmatpush1.msra.mxu0 %v2063
    %2159 = vmatprep.subr.mxu0 0.0
    %2160 = vmatpush1.msra.mxu0 %v2064
    %2161 = vmatprep.subr.mxu0 0.0
    %2162 = vmatpush1.msra.mxu0 %v2065
    %2163 = vmatprep.subr.mxu0 0.0
    %2164 = vmatpush1.msra.mxu0 %v2066
    %2165 = vmatprep.subr.mxu0 0.0
    %2166 = vmatpush1.msra.mxu0 %v2067
    %2167 = vmatprep.subr.mxu0 0.0
    %2168 = vmatpush1.msra.mxu0 %v2068
    %2169 = vmatprep.subr.mxu0 0.0
    %2170 = vmatpush1.msra.mxu0 %v2069
    %2171 = vmatprep.subr.mxu0 0.0
    %2172 = vmatpush1.msra.mxu0 %v2070
    %2173 = vmatprep.subr.mxu0 0.0
    %2174 = vmatpush1.msra.mxu0 %v2071
    %2175 = vmatprep.mubr.f32.mxu0 %v1849
    %2176 = vmatmul.mubr.f32.gmra.mrb[0].mxu0 %v1847
    %v2177 = vpop.f32.mrb[0].mxu0
    %v2178 = vadd.f32 %v2109, %v2177
    %v2179 = vpop.f32.mrb[0].mxu0
    %2180 = vdwg.mxu0
    %2181 = vmatprep.subr.mxu0 0.0
    %2182 = vmatpush1.msra.mxu0 %v2072
    %2183 = vmatprep.subr.mxu0 0.0
    %2184 = vmatpush1.msra.mxu0 %v2073
    %2185 = vmatprep.subr.mxu0 0.0
    %2186 = vmatpush1.msra.mxu0 %v2074
    %2187 = vmatprep.subr.mxu0 0.0
    %2188 = vmatpush1.msra.mxu0 %v2075
    %2189 = vmatprep.subr.mxu0 0.0
    %2190 = vmatpush1.msra.mxu0 %v2076
    %2191 = vmatprep.subr.mxu0 0.0
    %2192 = vmatpush1.msra.mxu0 %v2077
    %2193 = vmatprep.subr.mxu0 0.0
    %2194 = vmatpush1.msra.mxu0 %v2078
    %2195 = vmatprep.subr.mxu0 0.0
    %2196 = vmatpush1.msra.mxu0 %v2079
    %2197 = vmatprep.subr.mxu0 0.0
    %2198 = vmatpush1.msra.mxu0 %v2080
    %2199 = vmatprep.subr.mxu0 0.0
    %2200 = vmatpush1.msra.mxu0 %v2081
    %2201 = vmatprep.subr.mxu0 0.0
    %2202 = vmatpush1.msra.mxu0 %v2082
    %2203 = vmatprep.subr.mxu0 0.0
    %2204 = vmatpush1.msra.mxu0 %v2083
    %2205 = vmatprep.subr.mxu0 0.0
    %2206 = vmatpush1.msra.mxu0 %v2084
    %2207 = vmatprep.subr.mxu0 0.0
    %2208 = vmatpush1.msra.mxu0 %v2085
    %2209 = vmatprep.subr.mxu0 0.0
    %2210 = vmatpush1.msra.mxu0 %v2086
    %2211 = vmatprep.subr.mxu0 0.0
    %2212 = vmatpush1.msra.mxu0 %v2087
    %2213 = vmatprep.subr.mxu0 0.0
    %2214 = vmatpush1.msra.mxu0 %v2088
    %2215 = vmatprep.subr.mxu0 0.0
    %2216 = vmatpush1.msra.mxu0 %v2089
    %2217 = vmatprep.subr.mxu0 0.0
    %2218 = vmatpush1.msra.mxu0 %v2090
    %2219 = vmatprep.subr.mxu0 0.0
    %2220 = vmatpush1.msra.mxu0 %v2091
    %2221 = vmatprep.subr.mxu0 0.0
    %2222 = vmatpush1.msra.mxu0 %v2092
    %2223 = vmatprep.subr.mxu0 0.0
    %2224 = vmatpush1.msra.mxu0 %v2093
    %2225 = vmatprep.subr.mxu0 0.0
    %2226 = vmatpush1.msra.mxu0 %v2094
    %2227 = vmatprep.subr.mxu0 0.0
    %2228 = vmatpush1.msra.mxu0 %v2095
    %2229 = vmatprep.subr.mxu0 0.0
    %2230 = vmatpush1.msra.mxu0 %v2096
    %2231 = vmatprep.subr.mxu0 0.0
    %2232 = vmatpush1.msra.mxu0 %v2097
    %2233 = vmatprep.subr.mxu0 0.0
    %2234 = vmatpush1.msra.mxu0 %v2098
    %2235 = vmatprep.subr.mxu0 0.0
    %2236 = vmatpush1.msra.mxu0 %v2099
    %2237 = vmatprep.subr.mxu0 0.0
    %2238 = vmatpush1.msra.mxu0 %v2100
    %2239 = vmatprep.subr.mxu0 0.0
    %2240 = vmatpush1.msra.mxu0 %v2101
    %2241 = vmatprep.subr.mxu0 0.0
    %2242 = vmatpush1.msra.mxu0 %v2102
    %2243 = vmatprep.subr.mxu0 0.0
    %2244 = vmatpush1.msra.mxu0 %v2103
    %2245 = vmatprep.mubr.f32.mxu0 %v2013
    %2246 = vmatmul.mubr.f32.gmra.mrb[0].mxu0 %v2011
    %v2247 = vpop.f32.mrb[0].mxu0
    %v2248 = vadd.f32 %v2178, %v2247
    %v2249 = vpop.f32.mrb[0].mxu0
    %2250 = vdwg.mxu0
    %v2251 = vld [vmem:[%s5] sm:$0xff]
    %v2252 = vld [vmem:[%s5 + $0x8] sm:$0xff]
    %v2253 = vld [vmem:[%s5 + $0x10] sm:$0xff]
    %v2254 = vld [vmem:[%s5 + $0x18] sm:$0xff]
    %v2255 = vld [vmem:[%s5 + $0x20] sm:$0xff]
    %v2256 = vld [vmem:[%s5 + $0x28] sm:$0xff]
    %v2257 = vld [vmem:[%s5 + $0x30] sm:$0xff]
    %v2258 = vld [vmem:[%s5 + $0x38] sm:$0xff]
    %v2259 = vld [vmem:[%s5 + $0x40] sm:$0xff]
    %v2260 = vld [vmem:[%s5 + $0x48] sm:$0xff]
    %v2261 = vld [vmem:[%s5 + $0x50] sm:$0xff]
    %v2262 = vld [vmem:[%s5 + $0x58] sm:$0xff]
    %v2263 = vld [vmem:[%s5 + $0x60] sm:$0xff]
    %v2264 = vld [vmem:[%s5 + $0x68] sm:$0xff]
    %v2265 = vld [vmem:[%s5 + $0x70] sm:$0xff]
    %v2266 = vld [vmem:[%s5 + $0x78] sm:$0xff]
    %v2267 = vld [vmem:[%s6] sm:$0x1]
    %v2269 = vlaneseq
    %v2270 = vshrl.u32 %v2269, 7
    %v2271 = vsub.s32 0, %v2270
    %v2272 = vrot.slane %v2267, %v2271
    %2274 = vmatprep.subr.mxu0 0.0
    %2275 = vmatpush1.msra.mxu0 %v2251
    %2276 = vmatprep.subr.mxu0 0.0
    %2277 = vmatpush1.msra.mxu0 %v2252
    %2278 = vmatprep.subr.mxu0 0.0
    %2279 = vmatpush1.msra.mxu0 %v2253
    %2280 = vmatprep.subr.mxu0 0.0
    %2281 = vmatpush1.msra.mxu0 %v2254
    %2282 = vmatprep.subr.mxu0 0.0
    %2283 = vmatpush1.msra.mxu0 %v2255
    %2284 = vmatprep.subr.mxu0 0.0
    %2285 = vmatpush1.msra.mxu0 %v2256
    %2286 = vmatprep.subr.mxu0 0.0
    %2287 = vmatpush1.msra.mxu0 %v2257
    %2288 = vmatprep.subr.mxu0 0.0
    %2289 = vmatpush1.msra.mxu0 %v2258
    %2290 = vmatprep.subr.mxu0 0.0
    %2291 = vmatpush1.msra.mxu0 %v2259
    %2292 = vmatprep.subr.mxu0 0.0
    %2293 = vmatpush1.msra.mxu0 %v2260
    %2294 = vmatprep.subr.mxu0 0.0
    %2295 = vmatpush1.msra.mxu0 %v2261
    %2296 = vmatprep.subr.mxu0 0.0
    %2297 = vmatpush1.msra.mxu0 %v2262
    %2298 = vmatprep.subr.mxu0 0.0
    %2299 = vmatpush1.msra.mxu0 %v2263
    %2300 = vmatprep.subr.mxu0 0.0
    %2301 = vmatpush1.msra.mxu0 %v2264
    %2302 = vmatprep.subr.mxu0 0.0
    %2303 = vmatpush1.msra.mxu0 %v2265
    %2304 = vmatprep.subr.mxu0 0.0
    %2305 = vmatpush1.msra.mxu0 %v2266
    %2306 = vmatprep.subr.mxu0 0.0
    %2307 = vmatpush1.msra.mxu0 0.0
    %2308 = vmatprep.subr.mxu0 0.0
    %2309 = vmatpush1.msra.mxu0 0.0
    %2310 = vmatprep.subr.mxu0 0.0
    %2311 = vmatpush1.msra.mxu0 0.0
    %2312 = vmatprep.subr.mxu0 0.0
    %2313 = vmatpush1.msra.mxu0 0.0
    %2314 = vmatprep.subr.mxu0 0.0
    %2315 = vmatpush1.msra.mxu0 0.0
    %2316 = vmatprep.subr.mxu0 0.0
    %2317 = vmatpush1.msra.mxu0 0.0
    %2318 = vmatprep.subr.mxu0 0.0
    %2319 = vmatpush1.msra.mxu0 0.0
    %2320 = vmatprep.subr.mxu0 0.0
    %2321 = vmatpush1.msra.mxu0 0.0
    %2322 = vmatprep.subr.mxu0 0.0
    %2323 = vmatpush1.msra.mxu0 0.0
    %2324 = vmatprep.subr.mxu0 0.0
    %2325 = vmatpush1.msra.mxu0 0.0
    %2326 = vmatprep.subr.mxu0 0.0
    %2327 = vmatpush1.msra.mxu0 0.0
    %2328 = vmatprep.subr.mxu0 0.0
    %2329 = vmatpush1.msra.mxu0 0.0
    %2330 = vmatprep.subr.mxu0 0.0
    %2331 = vmatpush1.msra.mxu0 0.0
    %2332 = vmatprep.subr.mxu0 0.0
    %2333 = vmatpush1.msra.mxu0 0.0
    %2334 = vmatprep.subr.mxu0 0.0
    %2335 = vmatpush1.msra.mxu0 0.0
    %2336 = vmatprep.subr.mxu0 0.0
    %2337 = vmatpush1.msra.mxu0 0.0
    %2338 = vmatprep.mubr.f32.mxu0 0.0
    %2339 = vmatmul.mubr.f32.gmra.mrb[0].mxu0 %v2248
    %v2340 = vpop.f32.mrb[0].mxu0
    %v2341 = vadd.f32 %v2272, %v2340
    %v2342 = vpop.f32.mrb[0].mxu0
    %2343 = vdwg.mxu0
    %vm2344 = vcmp.gt.f32.partialorder %v2341, 0.0
    %v2345 = vmul.f32 %v2341, 0.01
    %v2346 = vsel %vm2344, %v2341, %v2345
    %v2347 = vld [vmem:[#allocation7] sm:$0xff]
    %v2348 = vld [vmem:[#allocation7 + $0x8] sm:$0xff]
    %v2349 = vld [vmem:[#allocation7 + $0x10] sm:$0xff]
    %v2350 = vld [vmem:[#allocation7 + $0x18] sm:$0xff]
    %v2351 = vld [vmem:[#allocation7 + $0x20] sm:$0xff]
    %v2352 = vld [vmem:[#allocation7 + $0x28] sm:$0xff]
    %v2353 = vld [vmem:[#allocation7 + $0x30] sm:$0xff]
    %v2354 = vld [vmem:[#allocation7 + $0x38] sm:$0xff]
    %v2355 = vld [vmem:[#allocation7 + $0x40] sm:$0xff]
    %v2356 = vld [vmem:[#allocation7 + $0x48] sm:$0xff]
    %v2357 = vld [vmem:[#allocation7 + $0x50] sm:$0xff]
    %v2358 = vld [vmem:[#allocation7 + $0x58] sm:$0xff]
    %v2359 = vld [vmem:[#allocation7 + $0x60] sm:$0xff]
    %v2360 = vld [vmem:[#allocation7 + $0x68] sm:$0xff]
    %v2361 = vld [vmem:[#allocation7 + $0x70] sm:$0xff]
    %v2362 = vld [vmem:[#allocation7 + $0x78] sm:$0xff]
    %v2363 = vld [vmem:[%s8] sm:$0x1]
    %v2365 = vlaneseq
    %v2366 = vshrl.u32 %v2365, 7
    %v2367 = vsub.s32 0, %v2366
    %v2368 = vrot.slane %v2363, %v2367
    %2370 = vmatprep.subr.mxu0 0.0
    %2371 = vmatpush1.msra.mxu0 %v2347
    %2372 = vmatprep.subr.mxu0 0.0
    %2373 = vmatpush1.msra.mxu0 %v2348
    %2374 = vmatprep.subr.mxu0 0.0
    %2375 = vmatpush1.msra.mxu0 %v2349
    %2376 = vmatprep.subr.mxu0 0.0
    %2377 = vmatpush1.msra.mxu0 %v2350
    %2378 = vmatprep.subr.mxu0 0.0
    %2379 = vmatpush1.msra.mxu0 %v2351
    %2380 = vmatprep.subr.mxu0 0.0
    %2381 = vmatpush1.msra.mxu0 %v2352
    %2382 = vmatprep.subr.mxu0 0.0
    %2383 = vmatpush1.msra.mxu0 %v2353
    %2384 = vmatprep.subr.mxu0 0.0
    %2385 = vmatpush1.msra.mxu0 %v2354
    %2386 = vmatprep.subr.mxu0 0.0
    %2387 = vmatpush1.msra.mxu0 %v2355
    %2388 = vmatprep.subr.mxu0 0.0
    %2389 = vmatpush1.msra.mxu0 %v2356
    %2390 = vmatprep.subr.mxu0 0.0
    %2391 = vmatpush1.msra.mxu0 %v2357
    %2392 = vmatprep.subr.mxu0 0.0
    %2393 = vmatpush1.msra.mxu0 %v2358
    %2394 = vmatprep.subr.mxu0 0.0
    %2395 = vmatpush1.msra.mxu0 %v2359
    %2396 = vmatprep.subr.mxu0 0.0
    %2397 = vmatpush1.msra.mxu0 %v2360
    %2398 = vmatprep.subr.mxu0 0.0
    %2399 = vmatpush1.msra.mxu0 %v2361
    %2400 = vmatprep.subr.mxu0 0.0
    %2401 = vmatpush1.msra.mxu0 %v2362
    %2402 = vmatprep.subr.mxu0 0.0
    %2403 = vmatpush1.msra.mxu0 0.0
    %2404 = vmatprep.subr.mxu0 0.0
    %2405 = vmatpush1.msra.mxu0 0.0
    %2406 = vmatprep.subr.mxu0 0.0
    %2407 = vmatpush1.msra.mxu0 0.0
    %2408 = vmatprep.subr.mxu0 0.0
    %2409 = vmatpush1.msra.mxu0 0.0
    %2410 = vmatprep.subr.mxu0 0.0
    %2411 = vmatpush1.msra.mxu0 0.0
    %2412 = vmatprep.subr.mxu0 0.0
    %2413 = vmatpush1.msra.mxu0 0.0
    %2414 = vmatprep.subr.mxu0 0.0
    %2415 = vmatpush1.msra.mxu0 0.0
    %2416 = vmatprep.subr.mxu0 0.0
    %2417 = vmatpush1.msra.mxu0 0.0
    %2418 = vmatprep.subr.mxu0 0.0
    %2419 = vmatpush1.msra.mxu0 0.0
    %2420 = vmatprep.subr.mxu0 0.0
    %2421 = vmatpush1.msra.mxu0 0.0
    %2422 = vmatprep.subr.mxu0 0.0
    %2423 = vmatpush1.msra.mxu0 0.0
    %2424 = vmatprep.subr.mxu0 0.0
    %2425 = vmatpush1.msra.mxu0 0.0
    %2426 = vmatprep.subr.mxu0 0.0
    %2427 = vmatpush1.msra.mxu0 0.0
    %2428 = vmatprep.subr.mxu0 0.0
    %2429 = vmatpush1.msra.mxu0 0.0
    %2430 = vmatprep.subr.mxu0 0.0
    %2431 = vmatpush1.msra.mxu0 0.0
    %2432 = vmatprep.subr.mxu0 0.0
    %2433 = vmatpush1.msra.mxu0 0.0
    %2434 = vmatprep.mubr.f32.mxu0 0.0
    %2435 = vmatmul.mubr.f32.gmra.mrb[0].mxu0 %v2346
    %v2436 = vpop.f32.mrb[0].mxu0
    %v2437 = vadd.f32 %v2368, %v2436
    %v2438 = vpop.f32.mrb[0].mxu0
    %2439 = vdwg.mxu0
    %v2440 = vmax.f32 %v2437, 0.0
    %2441 = vst [vmem:[#allocation9] sm:$0x3] %v2440
    // Predicated region
    $region50: #{illumination_classifier_forward.1} parent=1 // pred_check
      _
    $region51: #{illumination_classifier_forward.1} parent=1 // pred_check_branch
      %2443 = sbr.rel (0) target = $region53
    $region52: #{illumination_classifier_forward.1} parent=1 // pred_region
      %s2445 = ssub.s32 128, 128
      %2446 = vsyncadd [#allocation4], %s2445
      %s2448 = sshll.u32 [#allocation8], 4
      %s2449 = int_to_ptr.vmem [resolvable:$true] %s2448
      %2451 = dma.vmem_to_hbm [thread:$0]  %s2449, 128, %s9, [#allocation4]
    $region53: #{illumination_classifier_forward.1} parent=1 // pred_fallthru
      _
    // Predicated region
    $region54: #{illumination_classifier_forward.1} parent=1 // pred_check
      _
    $region55: #{illumination_classifier_forward.1} parent=1 // pred_check_branch
      %2453 = sbr.rel (0) target = $region57
    $region56: #{illumination_classifier_forward.1} parent=1 // pred_region
      %s2455 = ssub.s32 32, 32
      %2456 = vsyncadd [#allocation10], %s2455
      %s2458 = sshll.u32 [#allocation9], 4
      %s2459 = int_to_ptr.vmem [resolvable:$true] %s2458
      %2461 = dma.vmem_to_hbm [thread:$0]  %s2459, 32, %s10, [#allocation10]
    $region57: #{illumination_classifier_forward.1} parent=1 // pred_fallthru
      _
    // Predicated region
    $region58: #{illumination_classifier_forward.1} parent=1 // pred_check
      _
    $region59: #{illumination_classifier_forward.1} parent=1 // pred_check_branch
      %2463 = sbr.rel (0) target = $region61
    $region60: #{illumination_classifier_forward.1} parent=1 // pred_region
      %2464 = dma.done [#allocation4], 128
    $region61: #{illumination_classifier_forward.1} parent=1 // pred_fallthru
      _
    // Predicated region
    $region62: #{illumination_classifier_forward.1} parent=1 // pred_check
      _
    $region63: #{illumination_classifier_forward.1} parent=1 // pred_check_branch
      %2466 = sbr.rel (0) target = $region65
    $region64: #{illumination_classifier_forward.1} parent=1 // pred_region
      %2467 = dma.done [#allocation10], 32
    $region65: #{illumination_classifier_forward.1} parent=1 // pred_fallthru
      _
    %2468 = vsyncpa [#allocation3], 1
    %2469 = vsyncpa [#allocation6], 1
    %2470 = vsyncpa [#allocation4], 1
    %2471 = vsyncpa [#allocation10], 1

</llo_original>
